<compile_context>
chip_gen: v5e
topology: v5e:2x2
jax: 0.10.0
libtpu: 0.0.40
codegen_flags: <defaults>
</compile_context>

<pallas_src>
import jax
import jax.numpy as jnp
import numpy as np
from jax.experimental import pallas as pl
from jax.experimental.pallas import tpu as pltpu


# --------------------------- VMEM sizing helpers ---------------------------- #

def _round_up(v, m):
    return (v + m - 1) // m * m


def _padded_tile_bytes(shape, dtype):
    """VMEM footprint of an array including (sublane, 128-lane) padding."""
    itemsize = jnp.dtype(dtype).itemsize
    sub = {4: 8, 2: 16, 1: 32}.get(itemsize, 8)
    shape = (1,) * max(0, 2 - len(shape)) + tuple(int(d) for d in shape)
    lead = 1
    for d in shape[:-2]:
        lead *= d
    return lead * _round_up(shape[-2], sub) * _round_up(shape[-1], 128) * itemsize


def _vmem_capacity_bytes():
    try:
        info = pltpu.get_tpu_info()
        cap = getattr(info, "vmem_capacity_bytes", None)
        if cap:
            return int(cap)
    except Exception:
        pass
    return 64 * 1024 * 1024  # conservative fallback (v7x per-core VMEM)


def _vmem_need_bytes(TH, W, cin, planes, cout):
    need = 0
    need += 2 * _padded_tile_bytes((TH, W, cin), jnp.bfloat16)        # x tile (2x buf)
    need += 2 * _padded_tile_bytes((TH, W, cout), jnp.float32)        # out tile (2x buf)
    need += 2 * _padded_tile_bytes((cin, planes), jnp.bfloat16)       # w1
    need += 2 * _padded_tile_bytes((3, 3 * planes, planes), jnp.bfloat16)  # w2 grouped
    need += 2 * _padded_tile_bytes((planes, cout), jnp.bfloat16)      # w3
    need += 8 * _padded_tile_bytes((1, planes), jnp.float32)          # s1,b1,s2,b2
    need += 4 * _padded_tile_bytes((1, cout), jnp.float32)            # s3,b3
    need += _padded_tile_bytes((TH + 2, W + 2, planes), jnp.bfloat16)  # padded h1 scratch
    need += _padded_tile_bytes((2, W, cin), jnp.bfloat16)             # halo x rows
    # in-kernel transients (grouped taps + f32 accumulators / epilogues)
    need += _padded_tile_bytes((TH, W, 3 * planes), jnp.bfloat16)
    need += 2 * _padded_tile_bytes((TH * W, planes), jnp.float32)
    need += 2 * _padded_tile_bytes((TH * W, cout), jnp.float32)
    return need


def _choose_row_tile(N, H, W, cin, planes, cout, cap):
    """Largest divisor-of-H row tile (mult. of 8, or H) fitting the VMEM budget,
    preferring configurations with >= 4 grid steps for pipeline overlap."""
    cands = [d for d in range(1, H + 1)
             if H % d == 0 and (d % 8 == 0 or d == H)]
    budget = cap // 4
    fit = [d for d in cands if _vmem_need_bytes(d, W, cin, planes, cout) <= budget]
    if not fit:
        fit = [min(cands)]
    overlap = [d for d in fit if N * (H // d) >= 4]
    pool = overlap or fit
    return max(pool)


# ----------------------------- fused Pallas kernel -------------------------- #

def _bottleneck_kernel(x_ref, xhbm_ref, w1_ref, w2_ref, w3_ref,
                       s1_ref, b1_ref, s2_ref, b2_ref, s3_ref, b3_ref,
                       o_ref, h1p_ref, xh_ref, sem):
    """Fused conv1x1+bn+relu -> conv3x3(pad=1)+bn+relu -> conv1x1+bn+add+relu.

    One row-tile (TH output rows) of one image per grid step.  Intermediates
    never touch HBM; the 3x3's 1-row halo is recomputed from 2 DMA'd x rows.
    """
    TH, W, cin = x_ref.shape
    planes = w1_ref.shape[1]
    cout = w3_ref.shape[1]
    M = TH * W

    n = pl.program_id(0)
    r = pl.program_id(1)
    nr = pl.num_programs(1)
    has_top = r > 0
    has_bot = r < nr - 1

    # Kick off the (tiny) halo-row DMAs early so they overlap conv1 on the
    # main rows.  The main TH rows stream through the regular BlockSpec
    # pipeline (double-buffered by Pallas).
    @pl.when(has_top)
    def _():
        row = jnp.maximum(r * TH - 1, 0)
        pltpu.make_async_copy(xhbm_ref.at[n, row], xh_ref.at[0], sem.at[0]).start()

    @pl.when(has_bot)
    def _():
        row = jnp.minimum(r * TH + TH, nr * TH - 1)
        pltpu.make_async_copy(xhbm_ref.at[n, row], xh_ref.at[1], sem.at[1]).start()

    # Folded-BN per-channel params (VMEM-resident, read once into vregs).
    s1 = s1_ref[...]; b1 = b1_ref[...]
    s2 = s2_ref[...]; b2 = b2_ref[...]
    s3 = s3_ref[...]; b3 = b3_ref[...]

    # ---- conv1 (1x1) + bn1 + relu on the TH main rows (bf16 MXU, f32 acc) ----
    a1 = jnp.dot(x_ref[...].reshape(M, cin), w1_ref[...],
                 preferred_element_type=jnp.float32)
    h1 = jnp.maximum(a1 * s1 + b1, 0.0).astype(jnp.bfloat16)

    # ---- stage h1 (+ 1-pixel halo) into the bf16 padded scratch --------------
    # Zero only the border strips; the interior is fully overwritten each step
    # (megacore-safe: no reliance on "first iteration" state).
    zcol = jnp.zeros((TH + 2, 1, planes), jnp.bfloat16)
    h1p_ref[pl.ds(0, TH + 2), pl.ds(0, 1), :] = zcol
    h1p_ref[pl.ds(0, TH + 2), pl.ds(W + 1, 1), :] = zcol
    h1p_ref[pl.ds(1, TH), pl.ds(1, W), :] = h1.reshape(TH, W, planes)

    zrow = jnp.zeros((1, W, planes), jnp.bfloat16)

    @pl.when(r == 0)                       # image top: conv2 zero padding
    def _():
        h1p_ref[pl.ds(0, 1), pl.ds(1, W), :] = zrow

    @pl.when(r == nr - 1)                  # image bottom: conv2 zero padding
    def _():
        h1p_ref[pl.ds(TH + 1, 1), pl.ds(1, W), :] = zrow

    @pl.when(has_top)                      # recompute h1 for the top halo row
    def _():
        pltpu.make_async_copy(xhbm_ref.at[n, 0], xh_ref.at[0], sem.at[0]).wait()
        at = jnp.dot(xh_ref[0], w1_ref[...], preferred_element_type=jnp.float32)
        ht = jnp.maximum(at * s1 + b1, 0.0).astype(jnp.bfloat16)
        h1p_ref[pl.ds(0, 1), pl.ds(1, W), :] = ht.reshape(1, W, planes)

    @pl.when(has_bot)                      # recompute h1 for the bottom halo row
    def _():
        pltpu.make_async_copy(xhbm_ref.at[n, 0], xh_ref.at[1], sem.at[1]).wait()
        ab = jnp.dot(xh_ref[1], w1_ref[...], preferred_element_type=jnp.float32)
        hb = jnp.maximum(ab * s1 + b1, 0.0).astype(jnp.bfloat16)
        h1p_ref[pl.ds(TH + 1, 1), pl.ds(1, W), :] = hb.reshape(1, W, planes)

    # ---- conv2 (3x3, pad=1): taps grouped per kernel row ---------------------
    # For each kh the three kw taps are concatenated on the channel axis so the
    # matmul contracts K = 3*planes (3 matmuls instead of 9 K=planes matmuls).
    acc2 = jnp.zeros((M, planes), jnp.float32)
    for kh in range(3):
        taps = jnp.concatenate(
            [h1p_ref[pl.ds(kh, TH), pl.ds(kw, W), :] for kw in range(3)],
            axis=-1)                                     # (TH, W, 3*planes) bf16
        acc2 = acc2 + jnp.dot(taps.reshape(M, 3 * planes), w2_ref[kh],
                              preferred_element_type=jnp.float32)
    h2 = jnp.maximum(acc2 * s2 + b2, 0.0).astype(jnp.bfloat16)

    # ---- conv3 (1x1) + bn3 + identity add + relu -----------------------------
    a3 = jnp.dot(h2, w3_ref[...], preferred_element_type=jnp.float32)
    identity = x_ref[...].reshape(M, cin).astype(jnp.float32)  # re-read: keeps live set small
    out = jnp.maximum(a3 * s3 + b3 + identity, 0.0)
    o_ref[...] = out.reshape(TH, W, cout)


# ------------------------------ wrapper -------------------------------------- #

def bottleneck_forward(x, params):
    """x: (N, H, W, inplanes) NHWC f32.  stride=1, groups=1, downsample=None.

    params = (w1 (Cin,P), w2_hwio (3,3,P,P), w3 (P,Cout), s1,b1, s2,b2, s3,b3)
    with BN already folded into per-channel scale/bias.
    """
    N, H, W, cin = x.shape
    w1, w2_hwio, w3, s1, b1, s2, b2, s3, b3 = params
    planes = w1.shape[1]
    cout = w3.shape[1]
    assert cout == cin, "identity residual needs inplanes == planes * expansion"
    # TODO(synk): stride>1 (BlurPool/Downsample before conv3) and a non-None
    # `downsample` projection branch are not implemented (module defaults only).

    cap = _vmem_capacity_bytes()
    TH = _choose_row_tile(N, H, W, cin, planes, cout, cap)
    assert H % TH == 0
    HT = H // TH

    # bf16 streamed activations + bf16 MXU weights; folded-BN params stay f32.
    xb = x.astype(jnp.bfloat16)
    w1b = w1.astype(jnp.bfloat16)
    w2b = jnp.reshape(w2_hwio, (3, 3 * planes, planes)).astype(jnp.bfloat16)
    w3b = w3.astype(jnp.bfloat16)

    need = _vmem_need_bytes(TH, W, cin, planes, cout)
    vmem_limit = int(min(0.75 * cap, max(2 * need + (8 << 20), 16 << 20)))

    flops = 2 * N * H * W * (cin * planes + 9 * planes * planes + planes * cout)
    bytes_accessed = int(
        xb.size * 2 + N * H * W * cout * 4
        + (w1b.size + w2b.size + w3b.size) * 2
        + (4 * planes + 2 * cout) * 4)

    grid_spec = pltpu.PrefetchScalarGridSpec(
        num_scalar_prefetch=0,
        grid=(N, HT),
        in_specs=[
            pl.BlockSpec((None, TH, W, cin), lambda n, r: (n, r, 0, 0)),    # x rows (streamed bf16)
            pl.BlockSpec(memory_space=pl.ANY),                              # x in HBM (halo rows)
            pl.BlockSpec((cin, planes), lambda n, r: (0, 0)),               # w1 (resident)
            pl.BlockSpec((3, 3 * planes, planes), lambda n, r: (0, 0, 0)),  # w2 grouped (resident)
            pl.BlockSpec((planes, cout), lambda n, r: (0, 0)),              # w3 (resident)
            pl.BlockSpec((1, planes), lambda n, r: (0, 0)),                 # s1
            pl.BlockSpec((1, planes), lambda n, r: (0, 0)),                 # b1
            pl.BlockSpec((1, planes), lambda n, r: (0, 0)),                 # s2
            pl.BlockSpec((1, planes), lambda n, r: (0, 0)),                 # b2
            pl.BlockSpec((1, cout), lambda n, r: (0, 0)),                   # s3
            pl.BlockSpec((1, cout), lambda n, r: (0, 0)),                   # b3
        ],
        out_specs=pl.BlockSpec((None, TH, W, cout), lambda n, r: (n, r, 0, 0)),
        scratch_shapes=[
            pltpu.VMEM((TH + 2, W + 2, planes), jnp.bfloat16),   # padded h1 (bf16)
            pltpu.VMEM((2, W, cin), jnp.bfloat16),               # halo x rows
            pltpu.SemaphoreType.DMA((2,)),
        ],
    )

    return pl.pallas_call(
        _bottleneck_kernel,
        out_shape=jax.ShapeDtypeStruct((N, H, W, cout), jnp.float32),
        grid_spec=grid_spec,
        compiler_params=pltpu.CompilerParams(
            dimension_semantics=("parallel", "parallel"),
            vmem_limit_bytes=vmem_limit,
        ),
        cost_estimate=pl.CostEstimate(flops=flops, transcendentals=0,
                                      bytes_accessed=bytes_accessed),
    )(xb, xb, w1b, w2b, w3b,
      s1.reshape(1, planes), b1.reshape(1, planes),
      s2.reshape(1, planes), b2.reshape(1, planes),
      s3.reshape(1, cout), b3.reshape(1, cout))


# ------------------------------ main ----------------------------------------- #

if __name__ == "__main__":
    key = jax.random.PRNGKey(0)
    ks = jax.random.split(key, 8)

    N, H, W = 2, 16, 16
    inplanes, planes, expansion = 16, 4, 4
    out_c = planes * expansion  # == inplanes so the identity add is valid
    eps = 1e-5

    x = jax.random.normal(ks[0], (N, H, W, inplanes), jnp.float32)

    # conv weights in PyTorch layout (out, in, kh, kw)
    w1_t = 0.2 * jax.random.normal(ks[1], (planes, inplanes, 1, 1), jnp.float32)
    w2_t = 0.2 * jax.random.normal(ks[2], (planes, planes, 3, 3), jnp.float32)
    w3_t = 0.2 * jax.random.normal(ks[3], (out_c, planes, 1, 1), jnp.float32)

    def bn_params(k, c):
        k1, k2, k3, k4 = jax.random.split(k, 4)
        gamma = 1.0 + 0.1 * jax.random.normal(k1, (c,), jnp.float32)
        beta = 0.1 * jax.random.normal(k2, (c,), jnp.float32)
        mean = 0.1 * jax.random.normal(k3, (c,), jnp.float32)
        var = jax.random.uniform(k4, (c,), jnp.float32, minval=0.5, maxval=1.5)
        return gamma, beta, mean, var

    bn1 = bn_params(ks[4], planes)
    bn2 = bn_params(ks[5], planes)
    bn3 = bn_params(ks[6], out_c)

    def fold(bn):
        gamma, beta, mean, var = bn
        s = gamma / jnp.sqrt(var + eps)
        return s, beta - mean * s

    s1, b1 = fold(bn1)
    s2, b2 = fold(bn2)
    s3, b3 = fold(bn3)

    # re-lay-out conv weights for NHWC matmuls
    w1 = jnp.transpose(w1_t[:, :, 0, 0])               # (Cin, P)
    w2_hwio = jnp.transpose(w2_t, (2, 3, 1, 0))        # (3, 3, Cin, Cout)
    w3 = jnp.transpose(w3_t[:, :, 0, 0])               # (P, 4P)

    params = (w1, w2_hwio, w3, s1, b1, s2, b2, s3, b3)
    out = jax.block_until_ready(bottleneck_forward(x, params))

    # ---- pure-JAX reference (NHWC convs + eval-mode BN, all f32) ----
    def ref_forward(xin):
        dn = ("NHWC", "HWIO", "NHWC")

        def bn(y, p):
            gamma, beta, mean, var = p
            return gamma * (y - mean) / jnp.sqrt(var + eps) + beta

        w1h = jnp.transpose(w1_t, (2, 3, 1, 0))
        w2h = jnp.transpose(w2_t, (2, 3, 1, 0))
        w3h = jnp.transpose(w3_t, (2, 3, 1, 0))
        o = jax.lax.conv_general_dilated(xin, w1h, (1, 1), "SAME", dimension_numbers=dn)
        o = jax.nn.relu(bn(o, bn1))
        o = jax.lax.conv_general_dilated(o, w2h, (1, 1), "SAME", dimension_numbers=dn)
        o = jax.nn.relu(bn(o, bn2))
        o = jax.lax.conv_general_dilated(o, w3h, (1, 1), "SAME", dimension_numbers=dn)
        o = bn(o, bn3) + xin
        return jax.nn.relu(o)

    ref = jax.block_until_ready(ref_forward(x))
    np.testing.assert_allclose(np.asarray(out), np.asarray(ref), rtol=2e-2, atol=2e-2)
    print("KERNEL_OK")
</pallas_src>

<mosaic_0001>
module attributes {stable_mosaic.version = 11 : i64} {
  func.func @_bottleneck_kernel(%arg0: i32, %arg1: i32, %arg2: memref<1x8x16x16xbf16, #tpu.memory_space<vmem>>, %arg3: memref<2x16x16x16xbf16, #tpu.memory_space<any>>, %arg4: memref<16x4xbf16, #tpu.memory_space<vmem>>, %arg5: memref<3x12x4xbf16, #tpu.memory_space<vmem>>, %arg6: memref<4x16xbf16, #tpu.memory_space<vmem>>, %arg7: memref<1x4xf32, #tpu.memory_space<vmem>>, %arg8: memref<1x4xf32, #tpu.memory_space<vmem>>, %arg9: memref<1x4xf32, #tpu.memory_space<vmem>>, %arg10: memref<1x4xf32, #tpu.memory_space<vmem>>, %arg11: memref<1x16xf32, #tpu.memory_space<vmem>>, %arg12: memref<1x16xf32, #tpu.memory_space<vmem>>, %arg13: memref<1x8x16x16xf32, #tpu.memory_space<vmem>>, %arg14: memref<10x18x4xbf16, #tpu.memory_space<vmem>>, %arg15: memref<2x16x16xbf16, #tpu.memory_space<vmem>>, %arg16: memref<2x!tpu.dma_semaphore, #tpu.memory_space<semaphore_mem>>) attributes {dimension_semantics = [#tpu.dimension_semantics<parallel>, #tpu.dimension_semantics<parallel>], iteration_bounds = array<i64: 2, 2>, scalar_prefetch = 0 : i64, scratch_operands = 3 : i64, tpu.core_type = #tpu.core_type<tc>, window_params = [{transform_indices = @transform_0, window_bounds = array<i64: 1, 8, 16, 16>}, {}, {pipeline_mode = #tpu.pipeline_mode<synchronous>, transform_indices = @transform_2, window_bounds = array<i64: 16, 4>}, {pipeline_mode = #tpu.pipeline_mode<synchronous>, transform_indices = @transform_3, window_bounds = array<i64: 3, 12, 4>}, {pipeline_mode = #tpu.pipeline_mode<synchronous>, transform_indices = @transform_4, window_bounds = array<i64: 4, 16>}, {pipeline_mode = #tpu.pipeline_mode<synchronous>, transform_indices = @transform_5, window_bounds = array<i64: 1, 4>}, {pipeline_mode = #tpu.pipeline_mode<synchronous>, transform_indices = @transform_6, window_bounds = array<i64: 1, 4>}, {pipeline_mode = #tpu.pipeline_mode<synchronous>, transform_indices = @transform_7, window_bounds = array<i64: 1, 4>}, {pipeline_mode = #tpu.pipeline_mode<synchronous>, transform_indices = @transform_8, window_bounds = array<i64: 1, 4>}, {pipeline_mode = #tpu.pipeline_mode<synchronous>, transform_indices = @transform_9, window_bounds = array<i64: 1, 16>}, {pipeline_mode = #tpu.pipeline_mode<synchronous>, transform_indices = @transform_10, window_bounds = array<i64: 1, 16>}, {transform_indices = @transform_11, window_bounds = array<i64: 1, 8, 16, 16>}]} {
    %c0_i32 = arith.constant 0 : i32
    %0 = arith.cmpi sgt, %arg1, %c0_i32 : i32
    %c1_i32 = arith.constant 1 : i32
    %1 = arith.cmpi slt, %arg1, %c1_i32 : i32
    %2 = arith.extui %0 : i1 to i32
    %c0_i32_0 = arith.constant 0 : i32
    %3 = arith.cmpi ne, %2, %c0_i32_0 : i32
    scf.if %3 {
      %c8_i32 = arith.constant 8 : i32
      %92 = arith.muli %arg1, %c8_i32 : i32
      %c1_i32_87 = arith.constant 1 : i32
      %93 = arith.subi %92, %c1_i32_87 : i32
      %c0_i32_88 = arith.constant 0 : i32
      %94 = arith.maxsi %93, %c0_i32_88 : i32
      %c0_i32_89 = arith.constant 0 : i32
      %c0_i32_90 = arith.constant 0 : i32
      %c0_i32_91 = arith.constant 0 : i32
      %c0_i32_92 = arith.constant 0 : i32
      %95 = tpu.memref_slice %arg3[%arg0, %94, %c0_i32_91, %c0_i32_92] : memref<2x16x16x16xbf16, #tpu.memory_space<any>> -> memref<1x1x16x16xbf16, #tpu.memory_space<any>>
      %96 = tpu.memref_squeeze %95 : memref<1x1x16x16xbf16, #tpu.memory_space<any>> -> memref<16x16xbf16, #tpu.memory_space<any>>
      %c0_i32_93 = arith.constant 0 : i32
      %c0_i32_94 = arith.constant 0 : i32
      %97 = tpu.memref_slice %arg15[%c0_i32_89, %c0_i32_93, %c0_i32_94] : memref<2x16x16xbf16, #tpu.memory_space<vmem>> -> memref<1x16x16xbf16, #tpu.memory_space<vmem>>
      %98 = tpu.memref_squeeze %97 : memref<1x16x16xbf16, #tpu.memory_space<vmem>> -> memref<16x16xbf16, #tpu.memory_space<vmem>>
      %99 = tpu.memref_slice %arg16[%c0_i32_90] : memref<2x!tpu.dma_semaphore, #tpu.memory_space<semaphore_mem>> -> memref<1x!tpu.dma_semaphore, #tpu.memory_space<semaphore_mem>>
      %100 = tpu.memref_squeeze %99 : memref<1x!tpu.dma_semaphore, #tpu.memory_space<semaphore_mem>> -> memref<!tpu.dma_semaphore, #tpu.memory_space<semaphore_mem>>
      tpu.enqueue_dma source(%96 : memref<16x16xbf16, #tpu.memory_space<any>>) target(%98 : memref<16x16xbf16, #tpu.memory_space<vmem>>) target_semaphore(%100 : memref<!tpu.dma_semaphore, #tpu.memory_space<semaphore_mem>>)
    } else {
    }
    %4 = arith.extui %1 : i1 to i32
    %c0_i32_1 = arith.constant 0 : i32
    %5 = arith.cmpi ne, %4, %c0_i32_1 : i32
    scf.if %5 {
      %c8_i32 = arith.constant 8 : i32
      %92 = arith.muli %arg1, %c8_i32 : i32
      %c8_i32_87 = arith.constant 8 : i32
      %93 = arith.addi %92, %c8_i32_87 : i32
      %c15_i32 = arith.constant 15 : i32
      %94 = arith.minsi %93, %c15_i32 : i32
      %c1_i32_88 = arith.constant 1 : i32
      %c1_i32_89 = arith.constant 1 : i32
      %c0_i32_90 = arith.constant 0 : i32
      %c0_i32_91 = arith.constant 0 : i32
      %95 = tpu.memref_slice %arg3[%arg0, %94, %c0_i32_90, %c0_i32_91] : memref<2x16x16x16xbf16, #tpu.memory_space<any>> -> memref<1x1x16x16xbf16, #tpu.memory_space<any>>
      %96 = tpu.memref_squeeze %95 : memref<1x1x16x16xbf16, #tpu.memory_space<any>> -> memref<16x16xbf16, #tpu.memory_space<any>>
      %c0_i32_92 = arith.constant 0 : i32
      %c0_i32_93 = arith.constant 0 : i32
      %97 = tpu.memref_slice %arg15[%c1_i32_88, %c0_i32_92, %c0_i32_93] : memref<2x16x16xbf16, #tpu.memory_space<vmem>> -> memref<1x16x16xbf16, #tpu.memory_space<vmem>>
      %98 = tpu.memref_squeeze %97 : memref<1x16x16xbf16, #tpu.memory_space<vmem>> -> memref<16x16xbf16, #tpu.memory_space<vmem>>
      %99 = tpu.memref_slice %arg16[%c1_i32_89] : memref<2x!tpu.dma_semaphore, #tpu.memory_space<semaphore_mem>> -> memref<1x!tpu.dma_semaphore, #tpu.memory_space<semaphore_mem>>
      %100 = tpu.memref_squeeze %99 : memref<1x!tpu.dma_semaphore, #tpu.memory_space<semaphore_mem>> -> memref<!tpu.dma_semaphore, #tpu.memory_space<semaphore_mem>>
      tpu.enqueue_dma source(%96 : memref<16x16xbf16, #tpu.memory_space<any>>) target(%98 : memref<16x16xbf16, #tpu.memory_space<vmem>>) target_semaphore(%100 : memref<!tpu.dma_semaphore, #tpu.memory_space<semaphore_mem>>)
    } else {
    }
    %c0 = arith.constant 0 : index
    %c0_2 = arith.constant 0 : index
    %6 = vector.load %arg7[%c0, %c0_2] : memref<1x4xf32, #tpu.memory_space<vmem>>, vector<1x4xf32>
    %c0_3 = arith.constant 0 : index
    %c0_4 = arith.constant 0 : index
    %7 = vector.load %arg8[%c0_3, %c0_4] : memref<1x4xf32, #tpu.memory_space<vmem>>, vector<1x4xf32>
    %c0_5 = arith.constant 0 : index
    %c0_6 = arith.constant 0 : index
    %8 = vector.load %arg9[%c0_5, %c0_6] : memref<1x4xf32, #tpu.memory_space<vmem>>, vector<1x4xf32>
    %c0_7 = arith.constant 0 : index
    %c0_8 = arith.constant 0 : index
    %9 = vector.load %arg10[%c0_7, %c0_8] : memref<1x4xf32, #tpu.memory_space<vmem>>, vector<1x4xf32>
    %c0_9 = arith.constant 0 : index
    %c0_10 = arith.constant 0 : index
    %10 = vector.load %arg11[%c0_9, %c0_10] : memref<1x16xf32, #tpu.memory_space<vmem>>, vector<1x16xf32>
    %c0_11 = arith.constant 0 : index
    %c0_12 = arith.constant 0 : index
    %11 = vector.load %arg12[%c0_11, %c0_12] : memref<1x16xf32, #tpu.memory_space<vmem>>, vector<1x16xf32>
    %c0_13 = arith.constant 0 : index
    %c0_14 = arith.constant 0 : index
    %c0_15 = arith.constant 0 : index
    %c0_16 = arith.constant 0 : index
    %12 = vector.load %arg2[%c0_13, %c0_14, %c0_15, %c0_16] : memref<1x8x16x16xbf16, #tpu.memory_space<vmem>>, vector<1x8x16x16xbf16>
    %13 = vector.shape_cast %12 : vector<1x8x16x16xbf16> to vector<8x16x16xbf16>
    %14 = vector.shape_cast %13 : vector<8x16x16xbf16> to vector<128x16xbf16>
    %c0_17 = arith.constant 0 : index
    %c0_18 = arith.constant 0 : index
    %15 = vector.load %arg4[%c0_17, %c0_18] : memref<16x4xbf16, #tpu.memory_space<vmem>>, vector<16x4xbf16>
    %cst = arith.constant dense<0.000000e+00> : vector<128x4xf32>
    %16 = tpu.matmul %14, %15, %cst {dimension_numbers = #tpu.dot_dimension_numbers<[1], [0], [0], [1], [0, 0, 1, 1], [], []>} : vector<128x16xbf16>, vector<16x4xbf16>, vector<128x4xf32> -> vector<128x4xf32>
    %17 = vector.broadcast %6 : vector<1x4xf32> to vector<128x4xf32>
    %18 = arith.mulf %16, %17 : vector<128x4xf32>
    %19 = vector.broadcast %7 : vector<1x4xf32> to vector<128x4xf32>
    %20 = arith.addf %18, %19 : vector<128x4xf32>
    %cst_19 = arith.constant 0.000000e+00 : f32
    %21 = vector.broadcast %cst_19 : f32 to vector<128x4xf32>
    %22 = arith.maximumf %20, %21 : vector<128x4xf32>
    %23 = arith.truncf %22 : vector<128x4xf32> to vector<128x4xbf16>
    %cst_20 = arith.constant 0.000000e+00 : bf16
    %24 = vector.broadcast %cst_20 : bf16 to vector<10x1x4xbf16>
    %c0_21 = arith.constant 0 : index
    %c0_22 = arith.constant 0 : index
    %c0_23 = arith.constant 0 : index
    %25 = vector.load %arg14[%c0_21, %c0_22, %c0_23] : memref<10x18x4xbf16, #tpu.memory_space<vmem>>, vector<10x1x4xbf16>
    tpu.vector_store %arg14[%c0_21, %c0_22, %c0_23], %24 {strides = array<i32>} : memref<10x18x4xbf16, #tpu.memory_space<vmem>>, vector<10x1x4xbf16>,
    %c0_24 = arith.constant 0 : index
    %c17 = arith.constant 17 : index
    %c0_25 = arith.constant 0 : index
    %26 = vector.load %arg14[%c0_24, %c17, %c0_25] : memref<10x18x4xbf16, #tpu.memory_space<vmem>>, vector<10x1x4xbf16>
    tpu.vector_store %arg14[%c0_24, %c17, %c0_25], %24 {strides = array<i32>} : memref<10x18x4xbf16, #tpu.memory_space<vmem>>, vector<10x1x4xbf16>,
    %27 = vector.shape_cast %23 : vector<128x4xbf16> to vector<8x16x4xbf16>
    %c1 = arith.constant 1 : index
    %c1_26 = arith.constant 1 : index
    %c0_27 = arith.constant 0 : index
    %28 = vector.load %arg14[%c1, %c1_26, %c0_27] : memref<10x18x4xbf16, #tpu.memory_space<vmem>>, vector<8x16x4xbf16>
    tpu.vector_store %arg14[%c1, %c1_26, %c0_27], %27 {strides = array<i32>} : memref<10x18x4xbf16, #tpu.memory_space<vmem>>, vector<8x16x4xbf16>,
    %cst_28 = arith.constant 0.000000e+00 : bf16
    %29 = vector.broadcast %cst_28 : bf16 to vector<1x16x4xbf16>
    %c0_i32_29 = arith.constant 0 : i32
    %30 = arith.cmpi eq, %arg1, %c0_i32_29 : i32
    %31 = arith.extui %30 : i1 to i32
    %c0_i32_30 = arith.constant 0 : i32
    %32 = arith.cmpi ne, %31, %c0_i32_30 : i32
    scf.if %32 {
      %c0_87 = arith.constant 0 : index
      %c1_88 = arith.constant 1 : index
      %c0_89 = arith.constant 0 : index
      %92 = vector.load %arg14[%c0_87, %c1_88, %c0_89] : memref<10x18x4xbf16, #tpu.memory_space<vmem>>, vector<1x16x4xbf16>
      tpu.vector_store %arg14[%c0_87, %c1_88, %c0_89], %29 {strides = array<i32>} : memref<10x18x4xbf16, #tpu.memory_space<vmem>>, vector<1x16x4xbf16>,
    } else {
    }
    %c1_i32_31 = arith.constant 1 : i32
    %33 = arith.cmpi eq, %arg1, %c1_i32_31 : i32
    %34 = arith.extui %33 : i1 to i32
    %c0_i32_32 = arith.constant 0 : i32
    %35 = arith.cmpi ne, %34, %c0_i32_32 : i32
    scf.if %35 {
      %c9 = arith.constant 9 : index
      %c1_87 = arith.constant 1 : index
      %c0_88 = arith.constant 0 : index
      %92 = vector.load %arg14[%c9, %c1_87, %c0_88] : memref<10x18x4xbf16, #tpu.memory_space<vmem>>, vector<1x16x4xbf16>
      tpu.vector_store %arg14[%c9, %c1_87, %c0_88], %29 {strides = array<i32>} : memref<10x18x4xbf16, #tpu.memory_space<vmem>>, vector<1x16x4xbf16>,
    } else {
    }
    %36 = arith.extui %0 : i1 to i32
    %c0_i32_33 = arith.constant 0 : i32
    %37 = arith.cmpi ne, %36, %c0_i32_33 : i32
    scf.if %37 {
      %c0_i32_87 = arith.constant 0 : i32
      %c0_i32_88 = arith.constant 0 : i32
      %c0_i32_89 = arith.constant 0 : i32
      %c0_i32_90 = arith.constant 0 : i32
      %c0_i32_91 = arith.constant 0 : i32
      %92 = tpu.memref_slice %arg3[%arg0, %c0_i32_87, %c0_i32_90, %c0_i32_91] : memref<2x16x16x16xbf16, #tpu.memory_space<any>> -> memref<1x1x16x16xbf16, #tpu.memory_space<any>>
      %93 = tpu.memref_squeeze %92 : memref<1x1x16x16xbf16, #tpu.memory_space<any>> -> memref<16x16xbf16, #tpu.memory_space<any>>
      %c0_i32_92 = arith.constant 0 : i32
      %c0_i32_93 = arith.constant 0 : i32
      %94 = tpu.memref_slice %arg15[%c0_i32_88, %c0_i32_92, %c0_i32_93] : memref<2x16x16xbf16, #tpu.memory_space<vmem>> -> memref<1x16x16xbf16, #tpu.memory_space<vmem>>
      %95 = tpu.memref_squeeze %94 : memref<1x16x16xbf16, #tpu.memory_space<vmem>> -> memref<16x16xbf16, #tpu.memory_space<vmem>>
      %96 = tpu.memref_slice %arg16[%c0_i32_89] : memref<2x!tpu.dma_semaphore, #tpu.memory_space<semaphore_mem>> -> memref<1x!tpu.dma_semaphore, #tpu.memory_space<semaphore_mem>>
      %97 = tpu.memref_squeeze %96 : memref<1x!tpu.dma_semaphore, #tpu.memory_space<semaphore_mem>> -> memref<!tpu.dma_semaphore, #tpu.memory_space<semaphore_mem>>
      tpu.wait_dma2 semaphore(%97 : memref<!tpu.dma_semaphore, #tpu.memory_space<semaphore_mem>>) src(%93 : memref<16x16xbf16, #tpu.memory_space<any>>) dst(%95 : memref<16x16xbf16, #tpu.memory_space<vmem>>)
      %c0_94 = arith.constant 0 : index
      %c0_95 = arith.constant 0 : index
      %c0_96 = arith.constant 0 : index
      %98 = vector.load %arg15[%c0_94, %c0_95, %c0_96] : memref<2x16x16xbf16, #tpu.memory_space<vmem>>, vector<1x16x16xbf16>
      %99 = vector.shape_cast %98 : vector<1x16x16xbf16> to vector<16x16xbf16>
      %c0_97 = arith.constant 0 : index
      %c0_98 = arith.constant 0 : index
      %100 = vector.load %arg4[%c0_97, %c0_98] : memref<16x4xbf16, #tpu.memory_space<vmem>>, vector<16x4xbf16>
      %cst_99 = arith.constant dense<0.000000e+00> : vector<16x4xf32>
      %101 = tpu.matmul %99, %100, %cst_99 {dimension_numbers = #tpu.dot_dimension_numbers<[1], [0], [0], [1], [0, 0, 1, 1], [], []>} : vector<16x16xbf16>, vector<16x4xbf16>, vector<16x4xf32> -> vector<16x4xf32>
      %102 = vector.broadcast %6 : vector<1x4xf32> to vector<16x4xf32>
      %103 = arith.mulf %101, %102 : vector<16x4xf32>
      %104 = vector.broadcast %7 : vector<1x4xf32> to vector<16x4xf32>
      %105 = arith.addf %103, %104 : vector<16x4xf32>
      %cst_100 = arith.constant 0.000000e+00 : f32
      %106 = vector.broadcast %cst_100 : f32 to vector<16x4xf32>
      %107 = arith.maximumf %105, %106 : vector<16x4xf32>
      %108 = arith.truncf %107 : vector<16x4xf32> to vector<16x4xbf16>
      %109 = vector.shape_cast %108 : vector<16x4xbf16> to vector<1x16x4xbf16>
      %c0_101 = arith.constant 0 : index
      %c1_102 = arith.constant 1 : index
      %c0_103 = arith.constant 0 : index
      %110 = vector.load %arg14[%c0_101, %c1_102, %c0_103] : memref<10x18x4xbf16, #tpu.memory_space<vmem>>, vector<1x16x4xbf16>
      tpu.vector_store %arg14[%c0_101, %c1_102, %c0_103], %109 {strides = array<i32>} : memref<10x18x4xbf16, #tpu.memory_space<vmem>>, vector<1x16x4xbf16>,
    } else {
    }
    %38 = arith.extui %1 : i1 to i32
    %c0_i32_34 = arith.constant 0 : i32
    %39 = arith.cmpi ne, %38, %c0_i32_34 : i32
    scf.if %39 {
      %c0_i32_87 = arith.constant 0 : i32
      %c1_i32_88 = arith.constant 1 : i32
      %c1_i32_89 = arith.constant 1 : i32
      %c0_i32_90 = arith.constant 0 : i32
      %c0_i32_91 = arith.constant 0 : i32
      %92 = tpu.memref_slice %arg3[%arg0, %c0_i32_87, %c0_i32_90, %c0_i32_91] : memref<2x16x16x16xbf16, #tpu.memory_space<any>> -> memref<1x1x16x16xbf16, #tpu.memory_space<any>>
      %93 = tpu.memref_squeeze %92 : memref<1x1x16x16xbf16, #tpu.memory_space<any>> -> memref<16x16xbf16, #tpu.memory_space<any>>
      %c0_i32_92 = arith.constant 0 : i32
      %c0_i32_93 = arith.constant 0 : i32
      %94 = tpu.memref_slice %arg15[%c1_i32_88, %c0_i32_92, %c0_i32_93] : memref<2x16x16xbf16, #tpu.memory_space<vmem>> -> memref<1x16x16xbf16, #tpu.memory_space<vmem>>
      %95 = tpu.memref_squeeze %94 : memref<1x16x16xbf16, #tpu.memory_space<vmem>> -> memref<16x16xbf16, #tpu.memory_space<vmem>>
      %96 = tpu.memref_slice %arg16[%c1_i32_89] : memref<2x!tpu.dma_semaphore, #tpu.memory_space<semaphore_mem>> -> memref<1x!tpu.dma_semaphore, #tpu.memory_space<semaphore_mem>>
      %97 = tpu.memref_squeeze %96 : memref<1x!tpu.dma_semaphore, #tpu.memory_space<semaphore_mem>> -> memref<!tpu.dma_semaphore, #tpu.memory_space<semaphore_mem>>
      tpu.wait_dma2 semaphore(%97 : memref<!tpu.dma_semaphore, #tpu.memory_space<semaphore_mem>>) src(%93 : memref<16x16xbf16, #tpu.memory_space<any>>) dst(%95 : memref<16x16xbf16, #tpu.memory_space<vmem>>)
      %c1_94 = arith.constant 1 : index
      %c0_95 = arith.constant 0 : index
      %c0_96 = arith.constant 0 : index
      %98 = vector.load %arg15[%c1_94, %c0_95, %c0_96] : memref<2x16x16xbf16, #tpu.memory_space<vmem>>, vector<1x16x16xbf16>
      %99 = vector.shape_cast %98 : vector<1x16x16xbf16> to vector<16x16xbf16>
      %c0_97 = arith.constant 0 : index
      %c0_98 = arith.constant 0 : index
      %100 = vector.load %arg4[%c0_97, %c0_98] : memref<16x4xbf16, #tpu.memory_space<vmem>>, vector<16x4xbf16>
      %cst_99 = arith.constant dense<0.000000e+00> : vector<16x4xf32>
      %101 = tpu.matmul %99, %100, %cst_99 {dimension_numbers = #tpu.dot_dimension_numbers<[1], [0], [0], [1], [0, 0, 1, 1], [], []>} : vector<16x16xbf16>, vector<16x4xbf16>, vector<16x4xf32> -> vector<16x4xf32>
      %102 = vector.broadcast %6 : vector<1x4xf32> to vector<16x4xf32>
      %103 = arith.mulf %101, %102 : vector<16x4xf32>
      %104 = vector.broadcast %7 : vector<1x4xf32> to vector<16x4xf32>
      %105 = arith.addf %103, %104 : vector<16x4xf32>
      %cst_100 = arith.constant 0.000000e+00 : f32
      %106 = vector.broadcast %cst_100 : f32 to vector<16x4xf32>
      %107 = arith.maximumf %105, %106 : vector<16x4xf32>
      %108 = arith.truncf %107 : vector<16x4xf32> to vector<16x4xbf16>
      %109 = vector.shape_cast %108 : vector<16x4xbf16> to vector<1x16x4xbf16>
      %c9 = arith.constant 9 : index
      %c1_101 = arith.constant 1 : index
      %c0_102 = arith.constant 0 : index
      %110 = vector.load %arg14[%c9, %c1_101, %c0_102] : memref<10x18x4xbf16, #tpu.memory_space<vmem>>, vector<1x16x4xbf16>
      tpu.vector_store %arg14[%c9, %c1_101, %c0_102], %109 {strides = array<i32>} : memref<10x18x4xbf16, #tpu.memory_space<vmem>>, vector<1x16x4xbf16>,
    } else {
    }
    %cst_35 = arith.constant 0.000000e+00 : f32
    %40 = vector.broadcast %cst_35 : f32 to vector<128x4xf32>
    %c0_36 = arith.constant 0 : index
    %c0_37 = arith.constant 0 : index
    %c0_38 = arith.constant 0 : index
    %41 = vector.load %arg14[%c0_36, %c0_37, %c0_38] : memref<10x18x4xbf16, #tpu.memory_space<vmem>>, vector<8x16x4xbf16>
    %c0_39 = arith.constant 0 : index
    %c1_40 = arith.constant 1 : index
    %c0_41 = arith.constant 0 : index
    %42 = vector.load %arg14[%c0_39, %c1_40, %c0_41] : memref<10x18x4xbf16, #tpu.memory_space<vmem>>, vector<8x16x4xbf16>
    %c0_42 = arith.constant 0 : index
    %c2 = arith.constant 2 : index
    %c0_43 = arith.constant 0 : index
    %43 = vector.load %arg14[%c0_42, %c2, %c0_43] : memref<10x18x4xbf16, #tpu.memory_space<vmem>>, vector<8x16x4xbf16>
    %44 = tpu.concatenate %41, %42, %43 in 2 : vector<8x16x4xbf16>, vector<8x16x4xbf16>, vector<8x16x4xbf16> -> vector<8x16x12xbf16>
    %45 = vector.shape_cast %44 : vector<8x16x12xbf16> to vector<128x12xbf16>
    %c0_44 = arith.constant 0 : index
    %c0_45 = arith.constant 0 : index
    %c0_46 = arith.constant 0 : index
    %46 = vector.load %arg5[%c0_44, %c0_45, %c0_46] : memref<3x12x4xbf16, #tpu.memory_space<vmem>>, vector<1x12x4xbf16>
    %47 = vector.shape_cast %46 : vector<1x12x4xbf16> to vector<12x4xbf16>
    %cst_47 = arith.constant dense<0.000000e+00> : vector<128x4xf32>
    %48 = tpu.matmul %45, %47, %cst_47 {dimension_numbers = #tpu.dot_dimension_numbers<[1], [0], [0], [1], [0, 0, 1, 1], [], []>} : vector<128x12xbf16>, vector<12x4xbf16>, vector<128x4xf32> -> vector<128x4xf32>
    %49 = arith.addf %40, %48 : vector<128x4xf32>
    %c1_48 = arith.constant 1 : index
    %c0_49 = arith.constant 0 : index
    %c0_50 = arith.constant 0 : index
    %50 = vector.load %arg14[%c1_48, %c0_49, %c0_50] : memref<10x18x4xbf16, #tpu.memory_space<vmem>>, vector<8x16x4xbf16>
    %c1_51 = arith.constant 1 : index
    %c1_52 = arith.constant 1 : index
    %c0_53 = arith.constant 0 : index
    %51 = vector.load %arg14[%c1_51, %c1_52, %c0_53] : memref<10x18x4xbf16, #tpu.memory_space<vmem>>, vector<8x16x4xbf16>
    %c1_54 = arith.constant 1 : index
    %c2_55 = arith.constant 2 : index
    %c0_56 = arith.constant 0 : index
    %52 = vector.load %arg14[%c1_54, %c2_55, %c0_56] : memref<10x18x4xbf16, #tpu.memory_space<vmem>>, vector<8x16x4xbf16>
    %53 = tpu.concatenate %50, %51, %52 in 2 : vector<8x16x4xbf16>, vector<8x16x4xbf16>, vector<8x16x4xbf16> -> vector<8x16x12xbf16>
    %54 = vector.shape_cast %53 : vector<8x16x12xbf16> to vector<128x12xbf16>
    %c1_57 = arith.constant 1 : index
    %c0_58 = arith.constant 0 : index
    %c0_59 = arith.constant 0 : index
    %55 = vector.load %arg5[%c1_57, %c0_58, %c0_59] : memref<3x12x4xbf16, #tpu.memory_space<vmem>>, vector<1x12x4xbf16>
    %56 = vector.shape_cast %55 : vector<1x12x4xbf16> to vector<12x4xbf16>
    %cst_60 = arith.constant dense<0.000000e+00> : vector<128x4xf32>
    %57 = tpu.matmul %54, %56, %cst_60 {dimension_numbers = #tpu.dot_dimension_numbers<[1], [0], [0], [1], [0, 0, 1, 1], [], []>} : vector<128x12xbf16>, vector<12x4xbf16>, vector<128x4xf32> -> vector<128x4xf32>
    %58 = arith.addf %49, %57 : vector<128x4xf32>
    %c2_61 = arith.constant 2 : index
    %c0_62 = arith.constant 0 : index
    %c0_63 = arith.constant 0 : index
    %59 = vector.load %arg14[%c2_61, %c0_62, %c0_63] : memref<10x18x4xbf16, #tpu.memory_space<vmem>>, vector<8x16x4xbf16>
    %c2_64 = arith.constant 2 : index
    %c1_65 = arith.constant 1 : index
    %c0_66 = arith.constant 0 : index
    %60 = vector.load %arg14[%c2_64, %c1_65, %c0_66] : memref<10x18x4xbf16, #tpu.memory_space<vmem>>, vector<8x16x4xbf16>
    %c2_67 = arith.constant 2 : index
    %c2_68 = arith.constant 2 : index
    %c0_69 = arith.constant 0 : index
    %61 = vector.load %arg14[%c2_67, %c2_68, %c0_69] : memref<10x18x4xbf16, #tpu.memory_space<vmem>>, vector<8x16x4xbf16>
    %62 = tpu.concatenate %59, %60, %61 in 2 : vector<8x16x4xbf16>, vector<8x16x4xbf16>, vector<8x16x4xbf16> -> vector<8x16x12xbf16>
    %63 = vector.shape_cast %62 : vector<8x16x12xbf16> to vector<128x12xbf16>
    %c2_70 = arith.constant 2 : index
    %c0_71 = arith.constant 0 : index
    %c0_72 = arith.constant 0 : index
    %64 = vector.load %arg5[%c2_70, %c0_71, %c0_72] : memref<3x12x4xbf16, #tpu.memory_space<vmem>>, vector<1x12x4xbf16>
    %65 = vector.shape_cast %64 : vector<1x12x4xbf16> to vector<12x4xbf16>
    %cst_73 = arith.constant dense<0.000000e+00> : vector<128x4xf32>
    %66 = tpu.matmul %63, %65, %cst_73 {dimension_numbers = #tpu.dot_dimension_numbers<[1], [0], [0], [1], [0, 0, 1, 1], [], []>} : vector<128x12xbf16>, vector<12x4xbf16>, vector<128x4xf32> -> vector<128x4xf32>
    %67 = arith.addf %58, %66 : vector<128x4xf32>
    %68 = vector.broadcast %8 : vector<1x4xf32> to vector<128x4xf32>
    %69 = arith.mulf %67, %68 : vector<128x4xf32>
    %70 = vector.broadcast %9 : vector<1x4xf32> to vector<128x4xf32>
    %71 = arith.addf %69, %70 : vector<128x4xf32>
    %cst_74 = arith.constant 0.000000e+00 : f32
    %72 = vector.broadcast %cst_74 : f32 to vector<128x4xf32>
    %73 = arith.maximumf %71, %72 : vector<128x4xf32>
    %74 = arith.truncf %73 : vector<128x4xf32> to vector<128x4xbf16>
    %c0_75 = arith.constant 0 : index
    %c0_76 = arith.constant 0 : index
    %75 = vector.load %arg6[%c0_75, %c0_76] : memref<4x16xbf16, #tpu.memory_space<vmem>>, vector<4x16xbf16>
    %cst_77 = arith.constant dense<0.000000e+00> : vector<128x16xf32>
    %76 = tpu.matmul %74, %75, %cst_77 {dimension_numbers = #tpu.dot_dimension_numbers<[1], [0], [0], [1], [0, 0, 1, 1], [], []>} : vector<128x4xbf16>, vector<4x16xbf16>, vector<128x16xf32> -> vector<128x16xf32>
    %c0_78 = arith.constant 0 : index
    %c0_79 = arith.constant 0 : index
    %c0_80 = arith.constant 0 : index
    %c0_81 = arith.constant 0 : index
    %77 = vector.load %arg2[%c0_78, %c0_79, %c0_80, %c0_81] : memref<1x8x16x16xbf16, #tpu.memory_space<vmem>>, vector<1x8x16x16xbf16>
    %78 = vector.shape_cast %77 : vector<1x8x16x16xbf16> to vector<8x16x16xbf16>
    %79 = vector.shape_cast %78 : vector<8x16x16xbf16> to vector<128x16xbf16>
    %80 = arith.extf %79 : vector<128x16xbf16> to vector<128x16xf32>
    %81 = vector.broadcast %10 : vector<1x16xf32> to vector<128x16xf32>
    %82 = arith.mulf %76, %81 : vector<128x16xf32>
    %83 = vector.broadcast %11 : vector<1x16xf32> to vector<128x16xf32>
    %84 = arith.addf %82, %83 : vector<128x16xf32>
    %85 = arith.addf %84, %80 : vector<128x16xf32>
    %cst_82 = arith.constant 0.000000e+00 : f32
    %86 = vector.broadcast %cst_82 : f32 to vector<128x16xf32>
    %87 = arith.maximumf %85, %86 : vector<128x16xf32>
    %88 = vector.shape_cast %87 : vector<128x16xf32> to vector<8x16x16xf32>
    %c0_83 = arith.constant 0 : index
    %c0_84 = arith.constant 0 : index
    %c0_85 = arith.constant 0 : index
    %c0_86 = arith.constant 0 : index
    %89 = vector.load %arg13[%c0_83, %c0_84, %c0_85, %c0_86] : memref<1x8x16x16xf32, #tpu.memory_space<vmem>>, vector<1x8x16x16xf32>
    %90 = vector.shape_cast %89 : vector<1x8x16x16xf32> to vector<8x16x16xf32>
    %91 = vector.shape_cast %88 : vector<8x16x16xf32> to vector<1x8x16x16xf32>
    tpu.vector_store %arg13[%c0_83, %c0_84, %c0_85, %c0_86], %91 {strides = array<i32>} : memref<1x8x16x16xf32, #tpu.memory_space<vmem>>, vector<1x8x16x16xf32>,
    return
  }
  func.func @transform_0(%arg0: i32, %arg1: i32) -> (i32, i32, i32, i32) {
    %c0_i32 = arith.constant 0 : i32
    %c0_i32_0 = arith.constant 0 : i32
    %c0_i32_1 = arith.constant 0 : i32
    return %arg0, %arg1, %c0_i32, %c0_i32_0 : i32, i32, i32, i32
  }
  func.func @transform_2(%arg0: i32, %arg1: i32) -> (i32, i32) {
    %c0_i32 = arith.constant 0 : i32
    %c0_i32_0 = arith.constant 0 : i32
    %c0_i32_1 = arith.constant 0 : i32
    return %c0_i32, %c0_i32_0 : i32, i32
  }
  func.func @transform_3(%arg0: i32, %arg1: i32) -> (i32, i32, i32) {
    %c0_i32 = arith.constant 0 : i32
    %c0_i32_0 = arith.constant 0 : i32
    %c0_i32_1 = arith.constant 0 : i32
    %c0_i32_2 = arith.constant 0 : i32
    return %c0_i32, %c0_i32_0, %c0_i32_1 : i32, i32, i32
  }
  func.func @transform_4(%arg0: i32, %arg1: i32) -> (i32, i32) {
    %c0_i32 = arith.constant 0 : i32
    %c0_i32_0 = arith.constant 0 : i32
    %c0_i32_1 = arith.constant 0 : i32
    return %c0_i32, %c0_i32_0 : i32, i32
  }
  func.func @transform_5(%arg0: i32, %arg1: i32) -> (i32, i32) {
    %c0_i32 = arith.constant 0 : i32
    %c0_i32_0 = arith.constant 0 : i32
    %c0_i32_1 = arith.constant 0 : i32
    return %c0_i32, %c0_i32_0 : i32, i32
  }
  func.func @transform_6(%arg0: i32, %arg1: i32) -> (i32, i32) {
    %c0_i32 = arith.constant 0 : i32
    %c0_i32_0 = arith.constant 0 : i32
    %c0_i32_1 = arith.constant 0 : i32
    return %c0_i32, %c0_i32_0 : i32, i32
  }
  func.func @transform_7(%arg0: i32, %arg1: i32) -> (i32, i32) {
    %c0_i32 = arith.constant 0 : i32
    %c0_i32_0 = arith.constant 0 : i32
    %c0_i32_1 = arith.constant 0 : i32
    return %c0_i32, %c0_i32_0 : i32, i32
  }
  func.func @transform_8(%arg0: i32, %arg1: i32) -> (i32, i32) {
    %c0_i32 = arith.constant 0 : i32
    %c0_i32_0 = arith.constant 0 : i32
    %c0_i32_1 = arith.constant 0 : i32
    return %c0_i32, %c0_i32_0 : i32, i32
  }
  func.func @transform_9(%arg0: i32, %arg1: i32) -> (i32, i32) {
    %c0_i32 = arith.constant 0 : i32
    %c0_i32_0 = arith.constant 0 : i32
    %c0_i32_1 = arith.constant 0 : i32
    return %c0_i32, %c0_i32_0 : i32, i32
  }
  func.func @transform_10(%arg0: i32, %arg1: i32) -> (i32, i32) {
    %c0_i32 = arith.constant 0 : i32
    %c0_i32_0 = arith.constant 0 : i32
    %c0_i32_1 = arith.constant 0 : i32
    return %c0_i32, %c0_i32_0 : i32, i32
  }
  func.func @transform_11(%arg0: i32, %arg1: i32) -> (i32, i32, i32, i32) {
    %c0_i32 = arith.constant 0 : i32
    %c0_i32_0 = arith.constant 0 : i32
    %c0_i32_1 = arith.constant 0 : i32
    return %arg0, %arg1, %c0_i32, %c0_i32_0 : i32, i32, i32, i32
  }
}

</mosaic_0001>

<llo_original>
// kernel: tpu_custom_call.1
$region0: #{tpu_custom_call.1}
  #allocation0 [shape = 'u32[]', space=smem, size = 0x4, offset = 0x4, fixed_abs, tag = 'smem constant byte address 0x4 - core index']
  #allocation1 [shape = 'u32[72,128]{1,0:T(1,128)}', space=vmem, size = 0x9000, scoped, tag = 'internal scratch']
  #allocation2 [shape = 'bf16[10,18,4]{2,1,0:T(8,128)(2,1)}', space=vmem, size = 0xf000, scoped, tag = 'scratch operand']
  #allocation3 [shape = 'bf16[2,16,16]{2,1,0:T(8,128)(2,1)}', space=vmem, size = 0x2000, scoped, tag = 'scratch operand']
  #allocation4 [shape = 's32[2]{0}', space=sflag, size = 0x8, scoped, tag = 'scratch operand']
  #allocation9 [shape = 's32[]', space=sflag, size = 0x4, offset = 0, fixed_abs, tag = 'sflag constant byte address 0x0 - dummy sync flag']
  #allocation10 [shape = 's32[]', space=sflag, size = 0x4, offset = 0, fixed_abs, tag = 'sflag constant byte address 0x0 - dummy sync flag']
  #allocation11 [shape = 'u32[]', space=smem, size = 0x4, offset = 0x44, fixed_abs, tag = 'smem constant byte address 0x44 - assertion arg 0']
  #allocation12 [shape = 'u32[]', space=smem, size = 0x4, offset = 0x48, fixed_abs, tag = 'smem constant byte address 0x48 - assertion arg 1']
  #allocation13 [shape = 's32[]', space=sflag, size = 0x4, offset = 0, fixed_abs, tag = 'sflag constant byte address 0x0 - dummy sync flag']
  #allocation14 [shape = 's32[]', space=sflag, size = 0x4, offset = 0, fixed_abs, tag = 'sflag constant byte address 0x0 - dummy sync flag']
  %s0 = inlined_call_operand.hbm [shape: bf16[2,16,16,16], index: 0, kind: input, shape index: {}]
  %s1 = inlined_call_operand.hbm [shape: bf16[2,16,16,16], index: 1, kind: input, shape index: {}]
  %s2 = inlined_call_operand.vmem [shape: bf16[16,4], index: 2, kind: input, shape index: {}]
  %s3 = inlined_call_operand.vmem [shape: bf16[3,12,4], index: 3, kind: input, shape index: {}]
  %s4 = inlined_call_operand.vmem [shape: bf16[4,16], index: 4, kind: input, shape index: {}]
  %s5 = inlined_call_operand.vmem [shape: f32[1,4], index: 5, kind: input, shape index: {}]
  %s6 = inlined_call_operand.vmem [shape: f32[1,4], index: 6, kind: input, shape index: {}]
  %s7 = inlined_call_operand.vmem [shape: f32[1,4], index: 7, kind: input, shape index: {}]
  %s8 = inlined_call_operand.vmem [shape: f32[1,4], index: 8, kind: input, shape index: {}]
  %s9 = inlined_call_operand.vmem [shape: f32[1,16], index: 9, kind: input, shape index: {}]
  %s10 = inlined_call_operand.vmem [shape: f32[1,16], index: 10, kind: input, shape index: {}]
  %s11 = inlined_call_operand.hbm [shape: f32[2,16,16,16], index: 11, kind: output, shape index: {}]
  %s12 = sld [smem:[#allocation0]]
  $region109: #{tpu_custom_call.1} parent=0
    _
  %s14 = ssub.s32 1, %s12
  %s15 = scalar_select 0, %s14, %s12
  $region1: #{tpu_custom_call.1} parent=0
    #allocation5 [shape = 'u8[65536]{0}', space=vmem, size = 0x10000, scoped, tag = 'input window, operand 0']
    #allocation6 [shape = 's32[2]{0}', space=sflag, size = 0x8, scoped, tag = 'scoped memory for tpu_custom_call.1']
    #allocation7 [shape = 's32[2]{0}', space=sflag, size = 0x8, scoped, tag = 'scoped memory for tpu_custom_call.1']
    #allocation8 [shape = 'u8[131072]{0}', space=vmem, size = 0x20000, scoped, tag = 'output window, operand 0']
    %16 = vsyncpa [#allocation6], 0
    %s17 = scalar_lea.sflag [#allocation6], 1
    %18 = vsyncpa %s17, 0
    %19 = vsyncpa [#allocation7], 0
    %s20 = scalar_lea.sflag [#allocation7], 1
    %21 = vsyncpa %s20, 0
    loop: start=0, step=1, limit=6
    $region2: #{tpu_custom_call.1} parent=1 // loop_pre_header
      _
    $region3: #{tpu_custom_call.1} parent=1 // loop_header
      %s23 = sphi 0, %s27
      %p24 = scmp.ge.s32.totalorder %s23, 6
      %s30 = sphi 0, %s42
      %s31 = sphi 0, %s38
      %s32 = sphi 0, %s30
      %s33 = sphi 0, %s31
      %s34 = sphi 0, %s32
      %s35 = sphi 0, %s33
      %s47 = sphi 0, %s49
      %s50 = sphi 0, %s47
      %s51 = sphi 0, %s50
      %s67 = sphi 0, %s51
      %s71 = sphi 0, %s71
      %s73 = sphi 0, %s71
      %s74 = sphi 0, %s73
      %s88 = sphi 0, %s74
      %s92 = sphi 0, %s92
      %s94 = sphi 0, %s92
      %s95 = sphi 0, %s94
      %s109 = sphi 0, %s95
      %s113 = sphi 0, %s113
      %s115 = sphi 0, %s113
      %s116 = sphi 0, %s115
      %s130 = sphi 0, %s116
      %s134 = sphi 0, %s134
      %s136 = sphi 0, %s134
      %s137 = sphi 0, %s136
      %s151 = sphi 0, %s137
      %s155 = sphi 0, %s155
      %s157 = sphi 0, %s155
      %s158 = sphi 0, %s157
      %s172 = sphi 0, %s158
      %s176 = sphi 0, %s176
      %s178 = sphi 0, %s176
      %s179 = sphi 0, %s178
      %s193 = sphi 0, %s179
      %s197 = sphi 0, %s197
      %s199 = sphi 0, %s197
      %s200 = sphi 0, %s199
      %s214 = sphi 0, %s200
      %s218 = sphi 0, %s218
      %s220 = sphi 0, %s218
      %s221 = sphi 0, %s220
      %s235 = sphi 0, %s221
      %s239 = sphi 0, %s239
      %s241 = sphi 0, %s239
      %s242 = sphi 0, %s241
      %s256 = sphi 0, %s242
      %s264 = sphi 0, %s266
      %s267 = sphi 0, %s264
      %s268 = sphi 0, %s267
      %s284 = sphi 0, %s268
    $region4: #{tpu_custom_call.1} parent=1 // loop_header_branch
      %26 = sbr.rel (%p24) target = $region8
    $region5: #{tpu_custom_call.1} parent=1 // loop_body
      %s28 = ssub.s32 %s23, 1
      %s29 = ssub.s32 %s23, 2
      %s36 = sadd.s32 1, %s31
      %p37 = scmp.ge.s32.totalorder %s36, 2
      %s38 = scalar_select %p37, 0, %s36
      %s39 = sadd.s32 1, %s30
      %s40 = scalar_select %p37, %s39, %s30
      %p41 = scmp.ge.s32.totalorder %s40, 2
      %s42 = scalar_select %p41, 0, %s40
      %s43 = ssub.s32 %s30, %s42
      %s44 = ssub.s32 %s31, %s38
      %s45 = sor.u32 %s43, %s44
      %p46 = scmp.eq.s32.totalorder %s45, 0
      %s48 = sadd.s32 %s47, 1
      %s49 = scalar_select %p46, %s47, %s48
      %p52 = pneg %p46
      %p53 = scmp.eq.s32.totalorder %s23, 3
      %p54 = por %p52, %p53
      %p55 = scmp.ne.s32.totalorder %s47, %s50
      %p56 = scmp.eq.s32.totalorder %s23, 0
      %p57 = por %p55, %p56
      %p58 = scmp.ne.s32.totalorder %s47, %s50
      %p59 = scmp.eq.s32.totalorder %s28, 3
      %p60 = por %p58, %p59
      %p61 = scmp.ne.s32.totalorder %s50, %s51
      %p62 = scmp.eq.s32.totalorder %s28, 0
      %p63 = por %p61, %p62
      %p64 = scmp.ne.s32.totalorder %s50, %s51
      %p65 = scmp.eq.s32.totalorder %s29, 3
      %p66 = por %p64, %p65
      %p68 = scmp.ne.s32.totalorder %s51, %s67
      %p69 = scmp.eq.s32.totalorder %s29, 0
      %p70 = por %p68, %p69
      %s72 = sadd.s32 %s71, 1
      %p75 = scmp.eq.s32.totalorder %s23, 3
      %p76 = scmp.ne.s32.totalorder %s71, %s73
      %p77 = scmp.eq.s32.totalorder %s23, 0
      %p78 = por %p76, %p77
      %p79 = scmp.ne.s32.totalorder %s71, %s73
      %p80 = scmp.eq.s32.totalorder %s28, 3
      %p81 = por %p79, %p80
      %p82 = scmp.ne.s32.totalorder %s73, %s74
      %p83 = scmp.eq.s32.totalorder %s28, 0
      %p84 = por %p82, %p83
      %p85 = scmp.ne.s32.totalorder %s73, %s74
      %p86 = scmp.eq.s32.totalorder %s29, 3
      %p87 = por %p85, %p86
      %p89 = scmp.ne.s32.totalorder %s74, %s88
      %p90 = scmp.eq.s32.totalorder %s29, 0
      %p91 = por %p89, %p90
      %s93 = sadd.s32 %s92, 1
      %p96 = scmp.eq.s32.totalorder %s23, 3
      %p97 = scmp.ne.s32.totalorder %s92, %s94
      %p98 = scmp.eq.s32.totalorder %s23, 0
      %p99 = por %p97, %p98
      %p100 = scmp.ne.s32.totalorder %s92, %s94
      %p101 = scmp.eq.s32.totalorder %s28, 3
      %p102 = por %p100, %p101
      %p103 = scmp.ne.s32.totalorder %s94, %s95
      %p104 = scmp.eq.s32.totalorder %s28, 0
      %p105 = por %p103, %p104
      %p106 = scmp.ne.s32.totalorder %s94, %s95
      %p107 = scmp.eq.s32.totalorder %s29, 3
      %p108 = por %p106, %p107
      %p110 = scmp.ne.s32.totalorder %s95, %s109
      %p111 = scmp.eq.s32.totalorder %s29, 0
      %p112 = por %p110, %p111
      %s114 = sadd.s32 %s113, 1
      %p117 = scmp.eq.s32.totalorder %s23, 3
      %p118 = scmp.ne.s32.totalorder %s113, %s115
      %p119 = scmp.eq.s32.totalorder %s23, 0
      %p120 = por %p118, %p119
      %p121 = scmp.ne.s32.totalorder %s113, %s115
      %p122 = scmp.eq.s32.totalorder %s28, 3
      %p123 = por %p121, %p122
      %p124 = scmp.ne.s32.totalorder %s115, %s116
      %p125 = scmp.eq.s32.totalorder %s28, 0
      %p126 = por %p124, %p125
      %p127 = scmp.ne.s32.totalorder %s115, %s116
      %p128 = scmp.eq.s32.totalorder %s29, 3
      %p129 = por %p127, %p128
      %p131 = scmp.ne.s32.totalorder %s116, %s130
      %p132 = scmp.eq.s32.totalorder %s29, 0
      %p133 = por %p131, %p132
      %s135 = sadd.s32 %s134, 1
      %p138 = scmp.eq.s32.totalorder %s23, 3
      %p139 = scmp.ne.s32.totalorder %s134, %s136
      %p140 = scmp.eq.s32.totalorder %s23, 0
      %p141 = por %p139, %p140
      %p142 = scmp.ne.s32.totalorder %s134, %s136
      %p143 = scmp.eq.s32.totalorder %s28, 3
      %p144 = por %p142, %p143
      %p145 = scmp.ne.s32.totalorder %s136, %s137
      %p146 = scmp.eq.s32.totalorder %s28, 0
      %p147 = por %p145, %p146
      %p148 = scmp.ne.s32.totalorder %s136, %s137
      %p149 = scmp.eq.s32.totalorder %s29, 3
      %p150 = por %p148, %p149
      %p152 = scmp.ne.s32.totalorder %s137, %s151
      %p153 = scmp.eq.s32.totalorder %s29, 0
      %p154 = por %p152, %p153
      %s156 = sadd.s32 %s155, 1
      %p159 = scmp.eq.s32.totalorder %s23, 3
      %p160 = scmp.ne.s32.totalorder %s155, %s157
      %p161 = scmp.eq.s32.totalorder %s23, 0
      %p162 = por %p160, %p161
      %p163 = scmp.ne.s32.totalorder %s155, %s157
      %p164 = scmp.eq.s32.totalorder %s28, 3
      %p165 = por %p163, %p164
      %p166 = scmp.ne.s32.totalorder %s157, %s158
      %p167 = scmp.eq.s32.totalorder %s28, 0
      %p168 = por %p166, %p167
      %p169 = scmp.ne.s32.totalorder %s157, %s158
      %p170 = scmp.eq.s32.totalorder %s29, 3
      %p171 = por %p169, %p170
      %p173 = scmp.ne.s32.totalorder %s158, %s172
      %p174 = scmp.eq.s32.totalorder %s29, 0
      %p175 = por %p173, %p174
      %s177 = sadd.s32 %s176, 1
      %p180 = scmp.eq.s32.totalorder %s23, 3
      %p181 = scmp.ne.s32.totalorder %s176, %s178
      %p182 = scmp.eq.s32.totalorder %s23, 0
      %p183 = por %p181, %p182
      %p184 = scmp.ne.s32.totalorder %s176, %s178
      %p185 = scmp.eq.s32.totalorder %s28, 3
      %p186 = por %p184, %p185
      %p187 = scmp.ne.s32.totalorder %s178, %s179
      %p188 = scmp.eq.s32.totalorder %s28, 0
      %p189 = por %p187, %p188
      %p190 = scmp.ne.s32.totalorder %s178, %s179
      %p191 = scmp.eq.s32.totalorder %s29, 3
      %p192 = por %p190, %p191
      %p194 = scmp.ne.s32.totalorder %s179, %s193
      %p195 = scmp.eq.s32.totalorder %s29, 0
      %p196 = por %p194, %p195
      %s198 = sadd.s32 %s197, 1
      %p201 = scmp.eq.s32.totalorder %s23, 3
      %p202 = scmp.ne.s32.totalorder %s197, %s199
      %p203 = scmp.eq.s32.totalorder %s23, 0
      %p204 = por %p202, %p203
      %p205 = scmp.ne.s32.totalorder %s197, %s199
      %p206 = scmp.eq.s32.totalorder %s28, 3
      %p207 = por %p205, %p206
      %p208 = scmp.ne.s32.totalorder %s199, %s200
      %p209 = scmp.eq.s32.totalorder %s28, 0
      %p210 = por %p208, %p209
      %p211 = scmp.ne.s32.totalorder %s199, %s200
      %p212 = scmp.eq.s32.totalorder %s29, 3
      %p213 = por %p211, %p212
      %p215 = scmp.ne.s32.totalorder %s200, %s214
      %p216 = scmp.eq.s32.totalorder %s29, 0
      %p217 = por %p215, %p216
      %s219 = sadd.s32 %s218, 1
      %p222 = scmp.eq.s32.totalorder %s23, 3
      %p223 = scmp.ne.s32.totalorder %s218, %s220
      %p224 = scmp.eq.s32.totalorder %s23, 0
      %p225 = por %p223, %p224
      %p226 = scmp.ne.s32.totalorder %s218, %s220
      %p227 = scmp.eq.s32.totalorder %s28, 3
      %p228 = por %p226, %p227
      %p229 = scmp.ne.s32.totalorder %s220, %s221
      %p230 = scmp.eq.s32.totalorder %s28, 0
      %p231 = por %p229, %p230
      %p232 = scmp.ne.s32.totalorder %s220, %s221
      %p233 = scmp.eq.s32.totalorder %s29, 3
      %p234 = por %p232, %p233
      %p236 = scmp.ne.s32.totalorder %s221, %s235
      %p237 = scmp.eq.s32.totalorder %s29, 0
      %p238 = por %p236, %p237
      %s240 = sadd.s32 %s239, 1
      %p243 = scmp.eq.s32.totalorder %s23, 3
      %p244 = scmp.ne.s32.totalorder %s239, %s241
      %p245 = scmp.eq.s32.totalorder %s23, 0
      %p246 = por %p244, %p245
      %p247 = scmp.ne.s32.totalorder %s239, %s241
      %p248 = scmp.eq.s32.totalorder %s28, 3
      %p249 = por %p247, %p248
      %p250 = scmp.ne.s32.totalorder %s241, %s242
      %p251 = scmp.eq.s32.totalorder %s28, 0
      %p252 = por %p250, %p251
      %p253 = scmp.ne.s32.totalorder %s241, %s242
      %p254 = scmp.eq.s32.totalorder %s29, 3
      %p255 = por %p253, %p254
      %p257 = scmp.ne.s32.totalorder %s242, %s256
      %p258 = scmp.eq.s32.totalorder %s29, 0
      %p259 = por %p257, %p258
      %s260 = ssub.s32 %s30, %s42
      %s261 = ssub.s32 %s31, %s38
      %s262 = sor.u32 %s260, %s261
      %p263 = scmp.eq.s32.totalorder %s262, 0
      %s265 = sadd.s32 %s264, 1
      %s266 = scalar_select %p263, %s264, %s265
      %p269 = pneg %p263
      %p270 = scmp.eq.s32.totalorder %s23, 3
      %p271 = por %p269, %p270
      %p272 = scmp.ne.s32.totalorder %s264, %s267
      %p273 = scmp.eq.s32.totalorder %s23, 0
      %p274 = por %p272, %p273
      %p275 = scmp.ne.s32.totalorder %s264, %s267
      %p276 = scmp.eq.s32.totalorder %s28, 3
      %p277 = por %p275, %p276
      %p278 = scmp.ne.s32.totalorder %s267, %s268
      %p279 = scmp.eq.s32.totalorder %s28, 0
      %p280 = por %p278, %p279
      %p281 = scmp.ne.s32.totalorder %s267, %s268
      %p282 = scmp.eq.s32.totalorder %s29, 3
      %p283 = por %p281, %p282
      %p285 = scmp.ne.s32.totalorder %s268, %s284
      %p286 = scmp.eq.s32.totalorder %s29, 0
      %p287 = por %p285, %p286
      %p288 = scmp.le.s32.totalorder 1, %s23
      %p289 = scmp.lt.s32.totalorder %s23, 5
      %p290 = pnand %p288, %p289
      %p291 = pneg %p290
      // Predicated region
      $region9: #{tpu_custom_call.1} parent=5 // pred_check
        _
      $region10: #{tpu_custom_call.1} parent=5 // pred_check_branch
        %293 = sbr.rel (%p290) target = $region12
      $region11: #{tpu_custom_call.1} parent=5 // pred_region
        %s294 = ssub.s32 %s23, 1
        // Predicated region
        $region13: #{tpu_custom_call.1} parent=11 // pred_check
          %p295 = pneg %p84
        $region14: #{tpu_custom_call.1} parent=11 // pred_check_branch
          %297 = sbr.rel (%p295) target = $region16
        $region15: #{tpu_custom_call.1} parent=11 // pred_region
          _
        $region16: #{tpu_custom_call.1} parent=11 // pred_fallthru
          _
        // Predicated region
        $region17: #{tpu_custom_call.1} parent=11 // pred_check
          %p298 = pneg %p105
        $region18: #{tpu_custom_call.1} parent=11 // pred_check_branch
          %300 = sbr.rel (%p298) target = $region20
        $region19: #{tpu_custom_call.1} parent=11 // pred_region
          _
        $region20: #{tpu_custom_call.1} parent=11 // pred_fallthru
          _
        // Predicated region
        $region21: #{tpu_custom_call.1} parent=11 // pred_check
          %p301 = pneg %p126
        $region22: #{tpu_custom_call.1} parent=11 // pred_check_branch
          %303 = sbr.rel (%p301) target = $region24
        $region23: #{tpu_custom_call.1} parent=11 // pred_region
          _
        $region24: #{tpu_custom_call.1} parent=11 // pred_fallthru
          _
        // Predicated region
        $region25: #{tpu_custom_call.1} parent=11 // pred_check
          %p304 = pneg %p147
        $region26: #{tpu_custom_call.1} parent=11 // pred_check_branch
          %306 = sbr.rel (%p304) target = $region28
        $region27: #{tpu_custom_call.1} parent=11 // pred_region
          _
        $region28: #{tpu_custom_call.1} parent=11 // pred_fallthru
          _
        // Predicated region
        $region29: #{tpu_custom_call.1} parent=11 // pred_check
          %p307 = pneg %p168
        $region30: #{tpu_custom_call.1} parent=11 // pred_check_branch
          %309 = sbr.rel (%p307) target = $region32
        $region31: #{tpu_custom_call.1} parent=11 // pred_region
          _
        $region32: #{tpu_custom_call.1} parent=11 // pred_fallthru
          _
        // Predicated region
        $region33: #{tpu_custom_call.1} parent=11 // pred_check
          %p310 = pneg %p189
        $region34: #{tpu_custom_call.1} parent=11 // pred_check_branch
          %312 = sbr.rel (%p310) target = $region36
        $region35: #{tpu_custom_call.1} parent=11 // pred_region
          _
        $region36: #{tpu_custom_call.1} parent=11 // pred_fallthru
          _
        // Predicated region
        $region37: #{tpu_custom_call.1} parent=11 // pred_check
          %p313 = pneg %p210
        $region38: #{tpu_custom_call.1} parent=11 // pred_check_branch
          %315 = sbr.rel (%p313) target = $region40
        $region39: #{tpu_custom_call.1} parent=11 // pred_region
          _
        $region40: #{tpu_custom_call.1} parent=11 // pred_fallthru
          _
        // Predicated region
        $region41: #{tpu_custom_call.1} parent=11 // pred_check
          %p316 = pneg %p231
        $region42: #{tpu_custom_call.1} parent=11 // pred_check_branch
          %318 = sbr.rel (%p316) target = $region44
        $region43: #{tpu_custom_call.1} parent=11 // pred_region
          _
        $region44: #{tpu_custom_call.1} parent=11 // pred_fallthru
          _
        // Predicated region
        $region45: #{tpu_custom_call.1} parent=11 // pred_check
          %p319 = pneg %p252
        $region46: #{tpu_custom_call.1} parent=11 // pred_check_branch
          %321 = sbr.rel (%p319) target = $region48
        $region47: #{tpu_custom_call.1} parent=11 // pred_region
          _
        $region48: #{tpu_custom_call.1} parent=11 // pred_fallthru
          _
      $region12: #{tpu_custom_call.1} parent=5 // pred_fallthru
        _
      %p322 = scmp.lt.s32.totalorder %s23, 4
      // Predicated region
      $region49: #{tpu_custom_call.1} parent=5 // pred_check
        %p323 = pneg %p322
      $region50: #{tpu_custom_call.1} parent=5 // pred_check_branch
        %325 = sbr.rel (%p323) target = $region52
      $region51: #{tpu_custom_call.1} parent=5 // pred_region
        // Predicated region
        $region53: #{tpu_custom_call.1} parent=51 // pred_check
          %p326 = pneg %p57
        $region54: #{tpu_custom_call.1} parent=51 // pred_check_branch
          %328 = sbr.rel (%p326) target = $region56
        $region55: #{tpu_custom_call.1} parent=51 // pred_region
          %s329 = sand.u32 %s47, 1
          %s330 = scalar_lea.sflag [#allocation6], %s329
          %s331 = sand.u32 %s47, 1
          %s332 = smul.addr %s331, 64
          %s333 = scalar_lea.vmem [#allocation5], %s332
          %s334 = smul.u32 8, %s31
          %336 = vsyncadd %s330, 0
          %s337 = smul.addr %s334, 2
          %s338 = smul.addr %s30, 32
          %s339 = sadd.s32 %s337, %s338
          %s340 = smul.addr %s339, 4
          %s341 = scalar_lea.hbm %s0, %s340
          %s342 = sshll.u32 %s341, 4
          %s343 = int_to_ptr.hbm [resolvable:$true] %s342
          %s344 = sshll.u32 %s333, 4
          %s345 = int_to_ptr.vmem [resolvable:$true] %s344
          %350 = dma.hbm_to_vmem [thread:$0]  %s343, 1024, %s345, %s330, 64, 64, 4
        $region56: #{tpu_custom_call.1} parent=51 // pred_fallthru
          _
      $region52: #{tpu_custom_call.1} parent=5 // pred_fallthru
        _
      %p351 = scmp.le.s32.totalorder 1, %s23
      %p352 = scmp.lt.s32.totalorder %s23, 5
      %p353 = pnand %p351, %p352
      %p354 = pneg %p353
      // Predicated region
      $region57: #{tpu_custom_call.1} parent=5 // pred_check
        _
      $region58: #{tpu_custom_call.1} parent=5 // pred_check_branch
        %356 = sbr.rel (%p353) target = $region60
      $region59: #{tpu_custom_call.1} parent=5 // pred_region
        %s357 = ssub.s32 %s23, 1
        %s358 = sand.u32 %s50, 1
        %s359 = scalar_lea.sflag [#allocation6], %s358
        %s360 = sand.u32 %s50, 1
        %s361 = smul.addr %s360, 64
        %s362 = scalar_lea.vmem [#allocation5], %s361
        // Predicated region
        $region61: #{tpu_custom_call.1} parent=59 // pred_check
          %p363 = pneg %p63
        $region62: #{tpu_custom_call.1} parent=59 // pred_check_branch
          %365 = sbr.rel (%p363) target = $region64
        $region63: #{tpu_custom_call.1} parent=59 // pred_region
          %367 = dma.done %s359, 1024
        $region64: #{tpu_custom_call.1} parent=59 // pred_fallthru
          _
        %s368 = sand.u32 %s50, 1
        %s369 = scalar_lea.sflag [#allocation6], %s368
        %s370 = sand.u32 %s50, 1
        %s371 = smul.addr %s370, 64
        %s372 = scalar_lea.vmem [#allocation5], %s371
        %p373 = pneg %p63
        %p374 = pneg %p60
        %p375 = pneg %p84
        %p376 = pneg %p81
        %p377 = pneg %p105
        %p378 = pneg %p102
        %p379 = pneg %p126
        %p380 = pneg %p123
        %p381 = pneg %p147
        %p382 = pneg %p144
        %p383 = pneg %p168
        %p384 = pneg %p165
        %p385 = pneg %p189
        %p386 = pneg %p186
        %p387 = pneg %p210
        %p388 = pneg %p207
        %p389 = pneg %p231
        %p390 = pneg %p228
        %p391 = pneg %p252
        %p392 = pneg %p249
        %p393 = pneg %p280
        %p394 = pneg %p277
        %s395 = sand.u32 %s267, 1
        %s396 = scalar_lea.sflag [#allocation7], %s395
        %s397 = sand.u32 %s267, 1
        %s398 = smul.addr %s397, 128
        %s399 = scalar_lea.vmem [#allocation8], %s398
        %s400 = smul.u32 8, %s33
        %s401 = smul.u32 8, %s33
        %p403 = scmp.gt.s32.totalorder %s33, 0
        %p404 = scmp.lt.s32.totalorder %s33, 1
        // Predicated region
        $region65: #{tpu_custom_call.1} parent=59 // pred_check
          %p405 = pneg %p403
        $region66: #{tpu_custom_call.1} parent=59 // pred_check_branch
          %407 = sbr.rel (%p405) target = $region68
        $region67: #{tpu_custom_call.1} parent=59 // pred_region
          %s408 = smul.u32 %s33, 8
          %s409 = ssub.s32 %s408, 1
          %p410 = scmp.gt.s32.totalorder %s409, 0
          %s411 = scalar_select %p410, %s409, 0
          %s412 = smul.u32 %s411, 2
          %s413 = smul.u32 %s32, 32
          %s414 = sadd.s32 %s412, %s413
          %s415 = smul.addr %s414, 4
          %s416 = scalar_lea.hbm %s1, %s415
          // Predicated region
          $region69: #{tpu_custom_call.1} parent=67 // pred_check
            _
          $region70: #{tpu_custom_call.1} parent=67 // pred_check_branch
            %418 = sbr.rel target = $region72
          $region71: #{tpu_custom_call.1} parent=67 // pred_region
            %419 = sst [smem:[#allocation11]] [#allocation10]
            %420 = sst [smem:[#allocation12]] [#allocation9]
          $region72: #{tpu_custom_call.1} parent=67 // pred_fallthru
            _
          %422 = shalt.err (0)
          %s424 = sshll.u32 %s416, 4
          %s425 = int_to_ptr.hbm [resolvable:$true] %s424
          %s426 = sshll.u32 [#allocation3], 4
          %s427 = int_to_ptr.vmem [resolvable:$true] %s426
          %429 = dma.hbm_to_vmem [thread:$0]  %s425, 128, %s427, [#allocation4]
        $region68: #{tpu_custom_call.1} parent=59 // pred_fallthru
          _
        // Predicated region
        $region73: #{tpu_custom_call.1} parent=59 // pred_check
          %p430 = pneg %p404
        $region74: #{tpu_custom_call.1} parent=59 // pred_check_branch
          %432 = sbr.rel (%p430) target = $region76
        $region75: #{tpu_custom_call.1} parent=59 // pred_region
          %s433 = smul.u32 %s33, 8
          %s434 = sadd.s32 %s433, 8
          %p435 = scmp.lt.s32.totalorder %s434, 15
          %s436 = scalar_select %p435, %s434, 15
          %s437 = smul.u32 %s436, 2
          %s438 = smul.u32 %s32, 32
          %s439 = sadd.s32 %s437, %s438
          %s440 = smul.addr %s439, 4
          %s441 = scalar_lea.hbm %s1, %s440
          %s442 = scalar_lea.vmem [#allocation3], 8
          %s443 = scalar_lea.sflag [#allocation4], 1
          // Predicated region
          $region77: #{tpu_custom_call.1} parent=75 // pred_check
            _
          $region78: #{tpu_custom_call.1} parent=75 // pred_check_branch
            %445 = sbr.rel target = $region80
          $region79: #{tpu_custom_call.1} parent=75 // pred_region
            %446 = sst [smem:[#allocation11]] [#allocation14]
            %447 = sst [smem:[#allocation12]] [#allocation13]
          $region80: #{tpu_custom_call.1} parent=75 // pred_fallthru
            _
          %449 = shalt.err (0)
          %s451 = sshll.u32 %s441, 4
          %s452 = int_to_ptr.hbm [resolvable:$true] %s451
          %s453 = sshll.u32 %s442, 4
          %s454 = int_to_ptr.vmem [resolvable:$true] %s453
          %456 = dma.hbm_to_vmem [thread:$0]  %s452, 128, %s454, %s443
        $region76: #{tpu_custom_call.1} parent=59 // pred_fallthru
          _
        %v457 = vld [vmem:[%s5] sm:$0x1]
        %v458 = vld [vmem:[%s6] sm:$0x1]
        %v459 = vld [vmem:[%s7] sm:$0x1]
        %v460 = vld [vmem:[%s8] sm:$0x1]
        %v461 = vld [vmem:[%s9] sm:$0x1]
        %v462 = vld [vmem:[%s10] sm:$0x1]
        %v463 = vld [vmem:[%s362] sm:$0xf]
        %v464 = vld [vmem:[%s362 + $0x4] sm:$0xf]
        %v465 = vld [vmem:[%s362 + $0x8] sm:$0xf]
        %v466 = vld [vmem:[%s362 + $0xc] sm:$0xf]
        %v467 = vld [vmem:[%s362 + $0x10] sm:$0xf]
        %v468 = vld [vmem:[%s362 + $0x14] sm:$0xf]
        %v469 = vld [vmem:[%s362 + $0x18] sm:$0xf]
        %v470 = vld [vmem:[%s362 + $0x1c] sm:$0xf]
        %v471 = vld [vmem:[%s362 + $0x20] sm:$0xf]
        %v472 = vld [vmem:[%s362 + $0x24] sm:$0xf]
        %v473 = vld [vmem:[%s362 + $0x28] sm:$0xf]
        %v474 = vld [vmem:[%s362 + $0x2c] sm:$0xf]
        %v475 = vld [vmem:[%s362 + $0x30] sm:$0xf]
        %v476 = vld [vmem:[%s362 + $0x34] sm:$0xf]
        %v477 = vld [vmem:[%s362 + $0x38] sm:$0xf]
        %v478 = vld [vmem:[%s362 + $0x3c] sm:$0xf]
        %v479 = vld [vmem:[%s2] sm:$0xf]
        %v480 = vld [vmem:[%s2 + $0x4] sm:$0xf]
        %v497 = vunpack.c.l.b16 %v463
        %v498 = vunpack.c.l.b16 %v464
        %v499 = vunpack.c.l.b16 %v465
        %v500 = vunpack.c.l.b16 %v466
        %v501 = vunpack.c.l.b16 %v467
        %v502 = vunpack.c.l.b16 %v468
        %v503 = vunpack.c.l.b16 %v469
        %v504 = vunpack.c.l.b16 %v470
        %v505 = vunpack.c.l.b16 %v471
        %v506 = vunpack.c.l.b16 %v472
        %v507 = vunpack.c.l.b16 %v473
        %v508 = vunpack.c.l.b16 %v474
        %v509 = vunpack.c.l.b16 %v475
        %v510 = vunpack.c.l.b16 %v476
        %v511 = vunpack.c.l.b16 %v477
        %v512 = vunpack.c.l.b16 %v478
        %v513 = vpack.c.b16 %v498, %v497
        %v514 = vpack.c.b16 %v500, %v499
        %v515 = vpack.c.b16 %v502, %v501
        %v516 = vpack.c.b16 %v504, %v503
        %v517 = vpack.c.b16 %v506, %v505
        %v518 = vpack.c.b16 %v508, %v507
        %v519 = vpack.c.b16 %v510, %v509
        %v520 = vpack.c.b16 %v512, %v511
        %v523 = vunpack.c.l.b16 %v479
        %v524 = vunpack.c.l.b16 %v480
        %v525 = vpack.c.b16 %v524, %v523
        %vm527 = vcmask 130048
        %v529 = vsel %vm527, %v513, 0
        %v532 = vsel %vm527, %v514, 0
        %v535 = vsel %vm527, %v515, 0
        %v538 = vsel %vm527, %v516, 0
        %v541 = vsel %vm527, %v517, 0
        %v544 = vsel %vm527, %v518, 0
        %v547 = vsel %vm527, %v519, 0
        %v550 = vsel %vm527, %v520, 0
        %552 = vmatpush.bf16.msra.mxu0 0
        %553 = vmatpush.bf16.msra.mxu0 0
        %554 = vmatpush.bf16.msra.mxu0 0
        %555 = vmatpush.bf16.msra.mxu0 0
        %556 = vmatpush.bf16.msra.mxu0 0
        %557 = vmatpush.bf16.msra.mxu0 0
        %558 = vmatpush.bf16.msra.mxu0 0
        %559 = vmatpush.bf16.msra.mxu0 %v525
        %560 = vmatmul.bf16.gmra.mxu0 %v529
        %v561 = vpop.f32.mrf.mxu0
        %v562 = vadd.f32 0.0, %v561
        %v563 = vpop.f32.mrf.mxu0
        %v564 = vadd.f32 0.0, %v563
        %565 = vmatmul.bf16.gmra.mxu0 %v532
        %v566 = vpop.f32.mrf.mxu0
        %v567 = vadd.f32 0.0, %v566
        %v568 = vpop.f32.mrf.mxu0
        %v569 = vadd.f32 0.0, %v568
        %570 = vmatmul.bf16.gmra.mxu0 %v535
        %v571 = vpop.f32.mrf.mxu0
        %v572 = vadd.f32 0.0, %v571
        %v573 = vpop.f32.mrf.mxu0
        %v574 = vadd.f32 0.0, %v573
        %575 = vmatmul.bf16.gmra.mxu0 %v538
        %v576 = vpop.f32.mrf.mxu0
        %v577 = vadd.f32 0.0, %v576
        %v578 = vpop.f32.mrf.mxu0
        %v579 = vadd.f32 0.0, %v578
        %580 = vmatmul.bf16.gmra.mxu0 %v541
        %v581 = vpop.f32.mrf.mxu0
        %v582 = vadd.f32 0.0, %v581
        %v583 = vpop.f32.mrf.mxu0
        %v584 = vadd.f32 0.0, %v583
        %585 = vmatmul.bf16.gmra.mxu0 %v544
        %v586 = vpop.f32.mrf.mxu0
        %v587 = vadd.f32 0.0, %v586
        %v588 = vpop.f32.mrf.mxu0
        %v589 = vadd.f32 0.0, %v588
        %590 = vmatmul.bf16.gmra.mxu0 %v547
        %v591 = vpop.f32.mrf.mxu0
        %v592 = vadd.f32 0.0, %v591
        %v593 = vpop.f32.mrf.mxu0
        %v594 = vadd.f32 0.0, %v593
        %595 = vmatmul.bf16.gmra.mxu0 %v550
        %v596 = vpop.f32.mrf.mxu0
        %v597 = vadd.f32 0.0, %v596
        %v598 = vpop.f32.mrf.mxu0
        %v599 = vadd.f32 0.0, %v598
        %600 = vdwg.mxu0
        %v602 = vperm.slane %v457, 0
        %v604 = vmul.f32 %v562, %v602
        %v605 = vmul.f32 %v564, %v602
        %v606 = vmul.f32 %v567, %v602
        %v607 = vmul.f32 %v569, %v602
        %v608 = vmul.f32 %v572, %v602
        %v609 = vmul.f32 %v574, %v602
        %v610 = vmul.f32 %v577, %v602
        %v611 = vmul.f32 %v579, %v602
        %v612 = vmul.f32 %v582, %v602
        %v613 = vmul.f32 %v584, %v602
        %v614 = vmul.f32 %v587, %v602
        %v615 = vmul.f32 %v589, %v602
        %v616 = vmul.f32 %v592, %v602
        %v617 = vmul.f32 %v594, %v602
        %v618 = vmul.f32 %v597, %v602
        %v619 = vmul.f32 %v599, %v602
        %v621 = vperm.slane %v458, 0
        %v623 = vadd.f32 %v604, %v621
        %v624 = vadd.f32 %v605, %v621
        %v625 = vadd.f32 %v606, %v621
        %v626 = vadd.f32 %v607, %v621
        %v627 = vadd.f32 %v608, %v621
        %v628 = vadd.f32 %v609, %v621
        %v629 = vadd.f32 %v610, %v621
        %v630 = vadd.f32 %v611, %v621
        %v631 = vadd.f32 %v612, %v621
        %v632 = vadd.f32 %v613, %v621
        %v633 = vadd.f32 %v614, %v621
        %v634 = vadd.f32 %v615, %v621
        %v635 = vadd.f32 %v616, %v621
        %v636 = vadd.f32 %v617, %v621
        %v637 = vadd.f32 %v618, %v621
        %v638 = vadd.f32 %v619, %v621
        %v639 = vmax.f32 %v623, 0.0
        %v640 = vmax.f32 %v624, 0.0
        %v641 = vmax.f32 %v625, 0.0
        %v642 = vmax.f32 %v626, 0.0
        %v643 = vmax.f32 %v627, 0.0
        %v644 = vmax.f32 %v628, 0.0
        %v645 = vmax.f32 %v629, 0.0
        %v646 = vmax.f32 %v630, 0.0
        %v647 = vmax.f32 %v631, 0.0
        %v648 = vmax.f32 %v632, 0.0
        %v649 = vmax.f32 %v633, 0.0
        %v650 = vmax.f32 %v634, 0.0
        %v651 = vmax.f32 %v635, 0.0
        %v652 = vmax.f32 %v636, 0.0
        %v653 = vmax.f32 %v637, 0.0
        %v654 = vmax.f32 %v638, 0.0
        %v655 = vpack.c.bf16 %v639, %v639
        %v656 = vpack.c.bf16 %v640, %v640
        %v657 = vpack.c.bf16 %v641, %v641
        %v658 = vpack.c.bf16 %v642, %v642
        %v659 = vpack.c.bf16 %v643, %v643
        %v660 = vpack.c.bf16 %v644, %v644
        %v661 = vpack.c.bf16 %v645, %v645
        %v662 = vpack.c.bf16 %v646, %v646
        %v663 = vpack.c.bf16 %v647, %v647
        %v664 = vpack.c.bf16 %v648, %v648
        %v665 = vpack.c.bf16 %v649, %v649
        %v666 = vpack.c.bf16 %v650, %v650
        %v667 = vpack.c.bf16 %v651, %v651
        %v668 = vpack.c.bf16 %v652, %v652
        %v669 = vpack.c.bf16 %v653, %v653
        %v670 = vpack.c.bf16 %v654, %v654
        %vm671 = vcmask 24576
        %vm672 = vsmask.f32 256
        %vm673 = vmand %vm671, %vm672
        %v674 = vld [vmem:[#allocation2] sm:$0x1]
        %v675 = vsel %vm673, 0, %v674
        %676 = vst [vmem:[#allocation2] sm:$0x1] %v675
        %v677 = vld [vmem:[#allocation2 + $0xc] sm:$0x1]
        %v678 = vsel %vm673, 0, %v677
        %679 = vst [vmem:[#allocation2 + $0xc] sm:$0x1] %v678
        %v680 = vld [vmem:[#allocation2 + $0x18] sm:$0x1]
        %v681 = vsel %vm673, 0, %v680
        %682 = vst [vmem:[#allocation2 + $0x18] sm:$0x1] %v681
        %v683 = vld [vmem:[#allocation2 + $0x24] sm:$0x1]
        %v684 = vsel %vm673, 0, %v683
        %685 = vst [vmem:[#allocation2 + $0x24] sm:$0x1] %v684
        %v686 = vld [vmem:[#allocation2 + $0x30] sm:$0x1]
        %v687 = vsel %vm673, 0, %v686
        %688 = vst [vmem:[#allocation2 + $0x30] sm:$0x1] %v687
        %v689 = vld [vmem:[#allocation2 + $0x3c] sm:$0x1]
        %v690 = vsel %vm673, 0, %v689
        %691 = vst [vmem:[#allocation2 + $0x3c] sm:$0x1] %v690
        %v692 = vld [vmem:[#allocation2 + $0x48] sm:$0x1]
        %v693 = vsel %vm673, 0, %v692
        %694 = vst [vmem:[#allocation2 + $0x48] sm:$0x1] %v693
        %v695 = vld [vmem:[#allocation2 + $0x54] sm:$0x1]
        %v696 = vsel %vm673, 0, %v695
        %697 = vst [vmem:[#allocation2 + $0x54] sm:$0x1] %v696
        %v698 = vld [vmem:[#allocation2 + $0x60] sm:$0x1]
        %v699 = vsel %vm673, 0, %v698
        %700 = vst [vmem:[#allocation2 + $0x60] sm:$0x1] %v699
        %v701 = vld [vmem:[#allocation2 + $0x6c] sm:$0x1]
        %v702 = vsel %vm673, 0, %v701
        %703 = vst [vmem:[#allocation2 + $0x6c] sm:$0x1] %v702
        %vm704 = vsmask.f32 7938
        %vm705 = vmand %vm671, %vm704
        %v706 = vld [vmem:[#allocation2 + $0x8] sm:$0x1]
        %v707 = vsel %vm705, 0, %v706
        %708 = vst [vmem:[#allocation2 + $0x8] sm:$0x1] %v707
        %v709 = vld [vmem:[#allocation2 + $0x14] sm:$0x1]
        %v710 = vsel %vm705, 0, %v709
        %711 = vst [vmem:[#allocation2 + $0x14] sm:$0x1] %v710
        %v712 = vld [vmem:[#allocation2 + $0x20] sm:$0x1]
        %v713 = vsel %vm705, 0, %v712
        %714 = vst [vmem:[#allocation2 + $0x20] sm:$0x1] %v713
        %v715 = vld [vmem:[#allocation2 + $0x2c] sm:$0x1]
        %v716 = vsel %vm705, 0, %v715
        %717 = vst [vmem:[#allocation2 + $0x2c] sm:$0x1] %v716
        %v718 = vld [vmem:[#allocation2 + $0x38] sm:$0x1]
        %v719 = vsel %vm705, 0, %v718
        %720 = vst [vmem:[#allocation2 + $0x38] sm:$0x1] %v719
        %v721 = vld [vmem:[#allocation2 + $0x44] sm:$0x1]
        %v722 = vsel %vm705, 0, %v721
        %723 = vst [vmem:[#allocation2 + $0x44] sm:$0x1] %v722
        %v724 = vld [vmem:[#allocation2 + $0x50] sm:$0x1]
        %v725 = vsel %vm705, 0, %v724
        %726 = vst [vmem:[#allocation2 + $0x50] sm:$0x1] %v725
        %v727 = vld [vmem:[#allocation2 + $0x5c] sm:$0x1]
        %v728 = vsel %vm705, 0, %v727
        %729 = vst [vmem:[#allocation2 + $0x5c] sm:$0x1] %v728
        %v730 = vld [vmem:[#allocation2 + $0x68] sm:$0x1]
        %v731 = vsel %vm705, 0, %v730
        %732 = vst [vmem:[#allocation2 + $0x68] sm:$0x1] %v731
        %v733 = vld [vmem:[#allocation2 + $0x74] sm:$0x1]
        %v734 = vsel %vm705, 0, %v733
        %735 = vst [vmem:[#allocation2 + $0x74] sm:$0x1] %v734
        %vm736 = vsmask.f32 4368
        %vm737 = vmor %vm672, %vm736
        %v739 = vshrl.u32 %v655, 16
        %v741 = vrot.slane %v739, 7
        %v742 = vshll.u32 %v655, 16
        %v744 = vor.u32 %v741, %v742
        %v745 = vrot.slane %v741, 4
        %v747 = vshrl.u32 %v656, 16
        %v749 = vrot.slane %v747, 7
        %v750 = vshll.u32 %v656, 16
        %v752 = vor.u32 %v749, %v750
        %v753 = vsel %vm737, %v745, %v752
        %v754 = vrot.slane %v749, 4
        %v756 = vshrl.u32 %v657, 16
        %v758 = vrot.slane %v756, 7
        %v759 = vshll.u32 %v657, 16
        %v761 = vor.u32 %v758, %v759
        %v762 = vrot.slane %v758, 4
        %v764 = vshrl.u32 %v658, 16
        %v766 = vrot.slane %v764, 7
        %v767 = vshll.u32 %v658, 16
        %v769 = vor.u32 %v766, %v767
        %v770 = vsel %vm737, %v762, %v769
        %v771 = vrot.slane %v766, 4
        %v773 = vshrl.u32 %v659, 16
        %v775 = vrot.slane %v773, 7
        %v776 = vshll.u32 %v659, 16
        %v778 = vor.u32 %v775, %v776
        %v779 = vrot.slane %v775, 4
        %v781 = vshrl.u32 %v660, 16
        %v783 = vrot.slane %v781, 7
        %v784 = vshll.u32 %v660, 16
        %v786 = vor.u32 %v783, %v784
        %v787 = vsel %vm737, %v779, %v786
        %v788 = vrot.slane %v783, 4
        %v790 = vshrl.u32 %v661, 16
        %v792 = vrot.slane %v790, 7
        %v793 = vshll.u32 %v661, 16
        %v795 = vor.u32 %v792, %v793
        %v796 = vrot.slane %v792, 4
        %v798 = vshrl.u32 %v662, 16
        %v800 = vrot.slane %v798, 7
        %v801 = vshll.u32 %v662, 16
        %v803 = vor.u32 %v800, %v801
        %v804 = vsel %vm737, %v796, %v803
        %v805 = vrot.slane %v800, 4
        %v807 = vshrl.u32 %v663, 16
        %v809 = vrot.slane %v807, 7
        %v810 = vshll.u32 %v663, 16
        %v812 = vor.u32 %v809, %v810
        %v813 = vrot.slane %v809, 4
        %v815 = vshrl.u32 %v664, 16
        %v817 = vrot.slane %v815, 7
        %v818 = vshll.u32 %v664, 16
        %v820 = vor.u32 %v817, %v818
        %v821 = vsel %vm737, %v813, %v820
        %v822 = vrot.slane %v817, 4
        %v824 = vshrl.u32 %v665, 16
        %v826 = vrot.slane %v824, 7
        %v827 = vshll.u32 %v665, 16
        %v829 = vor.u32 %v826, %v827
        %v830 = vrot.slane %v826, 4
        %v832 = vshrl.u32 %v666, 16
        %v834 = vrot.slane %v832, 7
        %v835 = vshll.u32 %v666, 16
        %v837 = vor.u32 %v834, %v835
        %v838 = vsel %vm737, %v830, %v837
        %v839 = vrot.slane %v834, 4
        %v841 = vshrl.u32 %v667, 16
        %v843 = vrot.slane %v841, 7
        %v844 = vshll.u32 %v667, 16
        %v846 = vor.u32 %v843, %v844
        %v847 = vrot.slane %v843, 4
        %v849 = vshrl.u32 %v668, 16
        %v851 = vrot.slane %v849, 7
        %v852 = vshll.u32 %v668, 16
        %v854 = vor.u32 %v851, %v852
        %v855 = vsel %vm737, %v847, %v854
        %v856 = vrot.slane %v851, 4
        %v858 = vshrl.u32 %v669, 16
        %v860 = vrot.slane %v858, 7
        %v861 = vshll.u32 %v669, 16
        %v863 = vor.u32 %v860, %v861
        %v864 = vrot.slane %v860, 4
        %v866 = vshrl.u32 %v670, 16
        %v868 = vrot.slane %v866, 7
        %v869 = vshll.u32 %v670, 16
        %v871 = vor.u32 %v868, %v869
        %v872 = vsel %vm737, %v864, %v871
        %v873 = vrot.slane %v868, 4
        %s898 = scalar_lea.vmem [#allocation2], 12
        %vm899 = vcmask 27648
        %vm900 = vmand %vm899, %vm704
        %v901 = vld [vmem:[%s898] sm:$0xf]
        %v902 = vsel %vm900, %v744, %v901
        %903 = vst [vmem:[%s898] sm:$0xf] %v902
        %vm904 = vcmask 27648
        %905 = vst.msk [vmem:[%s898 + $0x4] sm:$0xf] %vm904, %v753
        %v906 = vld [vmem:[%s898 + $0x8] sm:$0x1]
        %v907 = vsel %vm673, %v754, %v906
        %908 = vst [vmem:[%s898 + $0x8] sm:$0x1] %v907
        %v909 = vld [vmem:[%s898 + $0xc] sm:$0xf]
        %v910 = vsel %vm900, %v761, %v909
        %911 = vst [vmem:[%s898 + $0xc] sm:$0xf] %v910
        %912 = vst.msk [vmem:[%s898 + $0x10] sm:$0xf] %vm904, %v770
        %v913 = vld [vmem:[%s898 + $0x14] sm:$0x1]
        %v914 = vsel %vm673, %v771, %v913
        %915 = vst [vmem:[%s898 + $0x14] sm:$0x1] %v914
        %v916 = vld [vmem:[%s898 + $0x18] sm:$0xf]
        %v917 = vsel %vm900, %v778, %v916
        %918 = vst [vmem:[%s898 + $0x18] sm:$0xf] %v917
        %919 = vst.msk [vmem:[%s898 + $0x1c] sm:$0xf] %vm904, %v787
        %v920 = vld [vmem:[%s898 + $0x20] sm:$0x1]
        %v921 = vsel %vm673, %v788, %v920
        %922 = vst [vmem:[%s898 + $0x20] sm:$0x1] %v921
        %v923 = vld [vmem:[%s898 + $0x24] sm:$0xf]
        %v924 = vsel %vm900, %v795, %v923
        %925 = vst [vmem:[%s898 + $0x24] sm:$0xf] %v924
        %926 = vst.msk [vmem:[%s898 + $0x28] sm:$0xf] %vm904, %v804
        %v927 = vld [vmem:[%s898 + $0x2c] sm:$0x1]
        %v928 = vsel %vm673, %v805, %v927
        %929 = vst [vmem:[%s898 + $0x2c] sm:$0x1] %v928
        %v930 = vld [vmem:[%s898 + $0x30] sm:$0xf]
        %v931 = vsel %vm900, %v812, %v930
        %932 = vst [vmem:[%s898 + $0x30] sm:$0xf] %v931
        %933 = vst.msk [vmem:[%s898 + $0x34] sm:$0xf] %vm904, %v821
        %v934 = vld [vmem:[%s898 + $0x38] sm:$0x1]
        %v935 = vsel %vm673, %v822, %v934
        %936 = vst [vmem:[%s898 + $0x38] sm:$0x1] %v935
        %v937 = vld [vmem:[%s898 + $0x3c] sm:$0xf]
        %v938 = vsel %vm900, %v829, %v937
        %939 = vst [vmem:[%s898 + $0x3c] sm:$0xf] %v938
        %940 = vst.msk [vmem:[%s898 + $0x40] sm:$0xf] %vm904, %v838
        %v941 = vld [vmem:[%s898 + $0x44] sm:$0x1]
        %v942 = vsel %vm673, %v839, %v941
        %943 = vst [vmem:[%s898 + $0x44] sm:$0x1] %v942
        %v944 = vld [vmem:[%s898 + $0x48] sm:$0xf]
        %v945 = vsel %vm900, %v846, %v944
        %946 = vst [vmem:[%s898 + $0x48] sm:$0xf] %v945
        %947 = vst.msk [vmem:[%s898 + $0x4c] sm:$0xf] %vm904, %v855
        %v948 = vld [vmem:[%s898 + $0x50] sm:$0x1]
        %v949 = vsel %vm673, %v856, %v948
        %950 = vst [vmem:[%s898 + $0x50] sm:$0x1] %v949
        %v951 = vld [vmem:[%s898 + $0x54] sm:$0xf]
        %v952 = vsel %vm900, %v863, %v951
        %953 = vst [vmem:[%s898 + $0x54] sm:$0xf] %v952
        %954 = vst.msk [vmem:[%s898 + $0x58] sm:$0xf] %vm904, %v872
        %v955 = vld [vmem:[%s898 + $0x5c] sm:$0x1]
        %v956 = vsel %vm673, %v873, %v955
        %957 = vst [vmem:[%s898 + $0x5c] sm:$0x1] %v956
        %p958 = scmp.eq.s32.totalorder %s33, 0
        // Predicated region
        $region81: #{tpu_custom_call.1} parent=59 // pred_check
          %p959 = pneg %p958
        $region82: #{tpu_custom_call.1} parent=59 // pred_check_branch
          %961 = sbr.rel (%p959) target = $region84
        $region83: #{tpu_custom_call.1} parent=59 // pred_region
          %v962 = vld [vmem:[#allocation2] sm:$0xf]
          %v963 = vsel %vm900, 0, %v962
          %964 = vst [vmem:[#allocation2] sm:$0xf] %v963
          %965 = vst.msk [vmem:[#allocation2 + $0x4] sm:$0xf] %vm904, 0
          %v966 = vld [vmem:[#allocation2 + $0x8] sm:$0x1]
          %v967 = vsel %vm673, 0, %v966
          %968 = vst [vmem:[#allocation2 + $0x8] sm:$0x1] %v967
        $region84: #{tpu_custom_call.1} parent=59 // pred_fallthru
          _
        %p969 = scmp.eq.s32.totalorder %s33, 1
        // Predicated region
        $region85: #{tpu_custom_call.1} parent=59 // pred_check
          %p970 = pneg %p969
        $region86: #{tpu_custom_call.1} parent=59 // pred_check_branch
          %972 = sbr.rel (%p970) target = $region88
        $region87: #{tpu_custom_call.1} parent=59 // pred_region
          %s973 = scalar_lea.vmem [#allocation2], 108
          %v974 = vld [vmem:[%s973] sm:$0xf]
          %v975 = vsel %vm900, 0, %v974
          %976 = vst [vmem:[%s973] sm:$0xf] %v975
          %977 = vst.msk [vmem:[%s973 + $0x4] sm:$0xf] %vm904, 0
          %v978 = vld [vmem:[%s973 + $0x8] sm:$0x1]
          %v979 = vsel %vm673, 0, %v978
          %980 = vst [vmem:[%s973 + $0x8] sm:$0x1] %v979
        $region88: #{tpu_custom_call.1} parent=59 // pred_fallthru
          _
        // Predicated region
        $region89: #{tpu_custom_call.1} parent=59 // pred_check
          %p981 = pneg %p403
        $region90: #{tpu_custom_call.1} parent=59 // pred_check_branch
          %983 = sbr.rel (%p981) target = $region92
        $region91: #{tpu_custom_call.1} parent=59 // pred_region
          %s984 = smul.u32 4, 2
          %s985 = smul.u32 %s984, 1
          %s986 = sshll.u32 %s985, 4
          %987 = dma.done [#allocation4], %s986
          %v988 = vld [vmem:[#allocation3] sm:$0xf]
          %v989 = vld [vmem:[#allocation3 + $0x4] sm:$0xf]
          %v990 = vld [vmem:[%s2] sm:$0xf]
          %v991 = vld [vmem:[%s2 + $0x4] sm:$0xf]
          %v994 = vunpack.c.l.b16 %v988
          %v995 = vunpack.c.l.b16 %v989
          %v996 = vpack.c.b16 %v995, %v994
          %v999 = vunpack.c.l.b16 %v990
          %v1000 = vunpack.c.l.b16 %v991
          %v1001 = vpack.c.b16 %v1000, %v999
          %v1004 = vsel %vm527, %v996, 0
          %1006 = vmatpush.bf16.msra.mxu0 0
          %1007 = vmatpush.bf16.msra.mxu0 0
          %1008 = vmatpush.bf16.msra.mxu0 0
          %1009 = vmatpush.bf16.msra.mxu0 0
          %1010 = vmatpush.bf16.msra.mxu0 0
          %1011 = vmatpush.bf16.msra.mxu0 0
          %1012 = vmatpush.bf16.msra.mxu0 0
          %1013 = vmatpush.bf16.msra.mxu0 %v1001
          %1014 = vmatmul.bf16.gmra.mxu0 %v1004
          %v1015 = vpop.f32.mrf.mxu0
          %v1016 = vadd.f32 0.0, %v1015
          %v1017 = vpop.f32.mrf.mxu0
          %v1018 = vadd.f32 0.0, %v1017
          %1019 = vdwg.mxu0
          %v1020 = vmul.f32 %v1016, %v602
          %v1021 = vmul.f32 %v1018, %v602
          %v1022 = vadd.f32 %v1020, %v621
          %v1023 = vadd.f32 %v1021, %v621
          %v1024 = vmax.f32 %v1022, 0.0
          %v1025 = vmax.f32 %v1023, 0.0
          %v1026 = vpack.c.bf16 %v1024, %v1024
          %v1027 = vpack.c.bf16 %v1025, %v1025
          %v1029 = vshrl.u32 %v1026, 16
          %v1031 = vrot.slane %v1029, 7
          %v1032 = vshll.u32 %v1026, 16
          %v1034 = vor.u32 %v1031, %v1032
          %v1035 = vrot.slane %v1031, 4
          %v1037 = vshrl.u32 %v1027, 16
          %v1039 = vrot.slane %v1037, 7
          %v1040 = vshll.u32 %v1027, 16
          %v1042 = vor.u32 %v1039, %v1040
          %v1043 = vsel %vm737, %v1035, %v1042
          %v1044 = vrot.slane %v1039, 4
          %v1048 = vld [vmem:[#allocation2] sm:$0xf]
          %v1049 = vsel %vm900, %v1034, %v1048
          %1050 = vst [vmem:[#allocation2] sm:$0xf] %v1049
          %1051 = vst.msk [vmem:[#allocation2 + $0x4] sm:$0xf] %vm904, %v1043
          %v1052 = vld [vmem:[#allocation2 + $0x8] sm:$0x1]
          %v1053 = vsel %vm673, %v1044, %v1052
          %1054 = vst [vmem:[#allocation2 + $0x8] sm:$0x1] %v1053
        $region92: #{tpu_custom_call.1} parent=59 // pred_fallthru
          _
        // Predicated region
        $region93: #{tpu_custom_call.1} parent=59 // pred_check
          %p1055 = pneg %p404
        $region94: #{tpu_custom_call.1} parent=59 // pred_check_branch
          %1057 = sbr.rel (%p1055) target = $region96
        $region95: #{tpu_custom_call.1} parent=59 // pred_region
          %s1058 = scalar_lea.sflag [#allocation4], 1
          %s1059 = smul.u32 4, 2
          %s1060 = smul.u32 %s1059, 1
          %s1061 = sshll.u32 %s1060, 4
          %1062 = dma.done %s1058, %s1061
          %s1063 = scalar_lea.vmem [#allocation3], 8
          %v1064 = vld [vmem:[%s1063] sm:$0xf]
          %v1065 = vld [vmem:[%s1063 + $0x4] sm:$0xf]
          %v1066 = vld [vmem:[%s2] sm:$0xf]
          %v1067 = vld [vmem:[%s2 + $0x4] sm:$0xf]
          %v1070 = vunpack.c.l.b16 %v1064
          %v1071 = vunpack.c.l.b16 %v1065
          %v1072 = vpack.c.b16 %v1071, %v1070
          %v1075 = vunpack.c.l.b16 %v1066
          %v1076 = vunpack.c.l.b16 %v1067
          %v1077 = vpack.c.b16 %v1076, %v1075
          %v1080 = vsel %vm527, %v1072, 0
          %1082 = vmatpush.bf16.msra.mxu0 0
          %1083 = vmatpush.bf16.msra.mxu0 0
          %1084 = vmatpush.bf16.msra.mxu0 0
          %1085 = vmatpush.bf16.msra.mxu0 0
          %1086 = vmatpush.bf16.msra.mxu0 0
          %1087 = vmatpush.bf16.msra.mxu0 0
          %1088 = vmatpush.bf16.msra.mxu0 0
          %1089 = vmatpush.bf16.msra.mxu0 %v1077
          %1090 = vmatmul.bf16.gmra.mxu0 %v1080
          %v1091 = vpop.f32.mrf.mxu0
          %v1092 = vadd.f32 0.0, %v1091
          %v1093 = vpop.f32.mrf.mxu0
          %v1094 = vadd.f32 0.0, %v1093
          %1095 = vdwg.mxu0
          %v1096 = vmul.f32 %v1092, %v602
          %v1097 = vmul.f32 %v1094, %v602
          %v1098 = vadd.f32 %v1096, %v621
          %v1099 = vadd.f32 %v1097, %v621
          %v1100 = vmax.f32 %v1098, 0.0
          %v1101 = vmax.f32 %v1099, 0.0
          %v1102 = vpack.c.bf16 %v1100, %v1100
          %v1103 = vpack.c.bf16 %v1101, %v1101
          %v1105 = vshrl.u32 %v1102, 16
          %v1107 = vrot.slane %v1105, 7
          %v1108 = vshll.u32 %v1102, 16
          %v1110 = vor.u32 %v1107, %v1108
          %v1111 = vrot.slane %v1107, 4
          %v1113 = vshrl.u32 %v1103, 16
          %v1115 = vrot.slane %v1113, 7
          %v1116 = vshll.u32 %v1103, 16
          %v1118 = vor.u32 %v1115, %v1116
          %v1119 = vsel %vm737, %v1111, %v1118
          %v1120 = vrot.slane %v1115, 4
          %s1124 = scalar_lea.vmem [#allocation2], 108
          %v1125 = vld [vmem:[%s1124] sm:$0xf]
          %v1126 = vsel %vm900, %v1110, %v1125
          %1127 = vst [vmem:[%s1124] sm:$0xf] %v1126
          %1128 = vst.msk [vmem:[%s1124 + $0x4] sm:$0xf] %vm904, %v1119
          %v1129 = vld [vmem:[%s1124 + $0x8] sm:$0x1]
          %v1130 = vsel %vm673, %v1120, %v1129
          %1131 = vst [vmem:[%s1124 + $0x8] sm:$0x1] %v1130
        $region96: #{tpu_custom_call.1} parent=59 // pred_fallthru
          _
        %v1132 = vld [vmem:[#allocation2] sm:$0xf]
        %v1133 = vld [vmem:[#allocation2 + $0x4] sm:$0xf]
        %v1134 = vld [vmem:[#allocation2 + $0xc] sm:$0xf]
        %v1135 = vld [vmem:[#allocation2 + $0x10] sm:$0xf]
        %v1136 = vld [vmem:[#allocation2 + $0x18] sm:$0xf]
        %v1137 = vld [vmem:[#allocation2 + $0x1c] sm:$0xf]
        %v1138 = vld [vmem:[#allocation2 + $0x24] sm:$0xf]
        %v1139 = vld [vmem:[#allocation2 + $0x28] sm:$0xf]
        %v1140 = vld [vmem:[#allocation2 + $0x30] sm:$0xf]
        %v1141 = vld [vmem:[#allocation2 + $0x34] sm:$0xf]
        %v1142 = vld [vmem:[#allocation2 + $0x3c] sm:$0xf]
        %v1143 = vld [vmem:[#allocation2 + $0x40] sm:$0xf]
        %v1144 = vld [vmem:[#allocation2 + $0x48] sm:$0xf]
        %v1145 = vld [vmem:[#allocation2 + $0x4c] sm:$0xf]
        %v1146 = vld [vmem:[#allocation2 + $0x54] sm:$0xf]
        %v1147 = vld [vmem:[#allocation2 + $0x58] sm:$0xf]
        %v1148 = vld [vmem:[#allocation2 + $0x8] sm:$0x1]
        %v1149 = vld [vmem:[#allocation2 + $0x14] sm:$0x1]
        %v1150 = vld [vmem:[#allocation2 + $0x20] sm:$0x1]
        %v1151 = vld [vmem:[#allocation2 + $0x2c] sm:$0x1]
        %v1152 = vld [vmem:[#allocation2 + $0x38] sm:$0x1]
        %v1153 = vld [vmem:[#allocation2 + $0x44] sm:$0x1]
        %v1154 = vld [vmem:[#allocation2 + $0x50] sm:$0x1]
        %v1155 = vld [vmem:[#allocation2 + $0x5c] sm:$0x1]
        %v1156 = vld [vmem:[#allocation2] sm:$0xe]
        %v1157 = vld [vmem:[#allocation2 + $0xc] sm:$0xe]
        %v1158 = vld [vmem:[#allocation2 + $0x18] sm:$0xe]
        %v1159 = vld [vmem:[#allocation2 + $0x24] sm:$0xe]
        %v1160 = vld [vmem:[#allocation2 + $0x30] sm:$0xe]
        %v1161 = vld [vmem:[#allocation2 + $0x3c] sm:$0xe]
        %v1162 = vld [vmem:[#allocation2 + $0x48] sm:$0xe]
        %v1163 = vld [vmem:[#allocation2 + $0x54] sm:$0xe]
        %v1180 = vunpack.c.l.b16 %v1132
        %v1181 = vunpack.c.l.b16 %v1133
        %v1182 = vunpack.c.l.b16 %v1134
        %v1183 = vunpack.c.l.b16 %v1135
        %v1184 = vunpack.c.l.b16 %v1136
        %v1185 = vunpack.c.l.b16 %v1137
        %v1186 = vunpack.c.l.b16 %v1138
        %v1187 = vunpack.c.l.b16 %v1139
        %v1188 = vunpack.c.l.b16 %v1140
        %v1189 = vunpack.c.l.b16 %v1141
        %v1190 = vunpack.c.l.b16 %v1142
        %v1191 = vunpack.c.l.b16 %v1143
        %v1192 = vunpack.c.l.b16 %v1144
        %v1193 = vunpack.c.l.b16 %v1145
        %v1194 = vunpack.c.l.b16 %v1146
        %v1195 = vunpack.c.l.b16 %v1147
        %v1196 = vpack.c.b16 %v1181, %v1180
        %v1197 = vpack.c.b16 %v1183, %v1182
        %v1198 = vpack.c.b16 %v1185, %v1184
        %v1199 = vpack.c.b16 %v1187, %v1186
        %v1200 = vpack.c.b16 %v1189, %v1188
        %v1201 = vpack.c.b16 %v1191, %v1190
        %v1202 = vpack.c.b16 %v1193, %v1192
        %v1203 = vpack.c.b16 %v1195, %v1194
        %v1212 = vunpack.c.l.b16 %v1148
        %v1213 = vunpack.c.l.b16 %v1149
        %v1214 = vunpack.c.l.b16 %v1150
        %v1215 = vunpack.c.l.b16 %v1151
        %v1216 = vunpack.c.l.b16 %v1152
        %v1217 = vunpack.c.l.b16 %v1153
        %v1218 = vunpack.c.l.b16 %v1154
        %v1219 = vunpack.c.l.b16 %v1155
        %v1220 = vpack.c.b16 %v1212, %v1212
        %v1221 = vpack.c.b16 %v1213, %v1213
        %v1222 = vpack.c.b16 %v1214, %v1214
        %v1223 = vpack.c.b16 %v1215, %v1215
        %v1224 = vpack.c.b16 %v1216, %v1216
        %v1225 = vpack.c.b16 %v1217, %v1217
        %v1226 = vpack.c.b16 %v1218, %v1218
        %v1227 = vpack.c.b16 %v1219, %v1219
        %vm1228 = vsmask.f32 7424
        %v1230 = vshrl.u32 %v1196, 16
        %v1232 = vshll.u32 %v1196, 16
        %v1234 = vrot.slane %v1232, 1
        %v1235 = vor.u32 %v1230, %v1234
        %v1237 = vshll.u32 %v1220, 16
        %v1239 = vrot.slane %v1237, 1
        %v1240 = vsel %vm1228, %v1235, %v1239
        %v1242 = vshrl.u32 %v1197, 16
        %v1244 = vshll.u32 %v1197, 16
        %v1246 = vrot.slane %v1244, 1
        %v1247 = vor.u32 %v1242, %v1246
        %v1249 = vshll.u32 %v1221, 16
        %v1251 = vrot.slane %v1249, 1
        %v1252 = vsel %vm1228, %v1247, %v1251
        %v1254 = vshrl.u32 %v1198, 16
        %v1256 = vshll.u32 %v1198, 16
        %v1258 = vrot.slane %v1256, 1
        %v1259 = vor.u32 %v1254, %v1258
        %v1261 = vshll.u32 %v1222, 16
        %v1263 = vrot.slane %v1261, 1
        %v1264 = vsel %vm1228, %v1259, %v1263
        %v1266 = vshrl.u32 %v1199, 16
        %v1268 = vshll.u32 %v1199, 16
        %v1270 = vrot.slane %v1268, 1
        %v1271 = vor.u32 %v1266, %v1270
        %v1273 = vshll.u32 %v1223, 16
        %v1275 = vrot.slane %v1273, 1
        %v1276 = vsel %vm1228, %v1271, %v1275
        %v1278 = vshrl.u32 %v1200, 16
        %v1280 = vshll.u32 %v1200, 16
        %v1282 = vrot.slane %v1280, 1
        %v1283 = vor.u32 %v1278, %v1282
        %v1285 = vshll.u32 %v1224, 16
        %v1287 = vrot.slane %v1285, 1
        %v1288 = vsel %vm1228, %v1283, %v1287
        %v1290 = vshrl.u32 %v1201, 16
        %v1292 = vshll.u32 %v1201, 16
        %v1294 = vrot.slane %v1292, 1
        %v1295 = vor.u32 %v1290, %v1294
        %v1297 = vshll.u32 %v1225, 16
        %v1299 = vrot.slane %v1297, 1
        %v1300 = vsel %vm1228, %v1295, %v1299
        %v1302 = vshrl.u32 %v1202, 16
        %v1304 = vshll.u32 %v1202, 16
        %v1306 = vrot.slane %v1304, 1
        %v1307 = vor.u32 %v1302, %v1306
        %v1309 = vshll.u32 %v1226, 16
        %v1311 = vrot.slane %v1309, 1
        %v1312 = vsel %vm1228, %v1307, %v1311
        %v1314 = vshrl.u32 %v1203, 16
        %v1316 = vshll.u32 %v1203, 16
        %v1318 = vrot.slane %v1316, 1
        %v1319 = vor.u32 %v1314, %v1318
        %v1321 = vshll.u32 %v1227, 16
        %v1323 = vrot.slane %v1321, 1
        %v1324 = vsel %vm1228, %v1319, %v1323
        %1325 = vrot.lane.b32.xlu0 %v1240, 4
        %v1326 = vpop.permute.xlu0 %1325
        %1327 = vrot.lane.b32.xlu0 %v1252, 4
        %v1328 = vpop.permute.xlu0 %1327
        %1329 = vrot.lane.b32.xlu0 %v1264, 4
        %v1330 = vpop.permute.xlu0 %1329
        %1331 = vrot.lane.b32.xlu0 %v1276, 4
        %v1332 = vpop.permute.xlu0 %1331
        %1333 = vrot.lane.b32.xlu0 %v1288, 4
        %v1334 = vpop.permute.xlu0 %1333
        %1335 = vrot.lane.b32.xlu0 %v1300, 4
        %v1336 = vpop.permute.xlu0 %1335
        %1337 = vrot.lane.b32.xlu0 %v1312, 4
        %v1338 = vpop.permute.xlu0 %1337
        %1339 = vrot.lane.b32.xlu0 %v1324, 4
        %v1340 = vpop.permute.xlu0 %1339
        %v1349 = vunpack.c.l.b16 %v1156
        %v1350 = vunpack.c.l.b16 %v1157
        %v1351 = vunpack.c.l.b16 %v1158
        %v1352 = vunpack.c.l.b16 %v1159
        %v1353 = vunpack.c.l.b16 %v1160
        %v1354 = vunpack.c.l.b16 %v1161
        %v1355 = vunpack.c.l.b16 %v1162
        %v1356 = vunpack.c.l.b16 %v1163
        %v1357 = vpack.c.b16 %v1181, %v1349
        %v1358 = vpack.c.b16 %v1183, %v1350
        %v1359 = vpack.c.b16 %v1185, %v1351
        %v1360 = vpack.c.b16 %v1187, %v1352
        %v1361 = vpack.c.b16 %v1189, %v1353
        %v1362 = vpack.c.b16 %v1191, %v1354
        %v1363 = vpack.c.b16 %v1193, %v1355
        %v1364 = vpack.c.b16 %v1195, %v1356
        %vm1365 = vcmask 1046528
        %v1366 = vrot.slane %v1357, 1
        %v1367 = vrot.slane %v1220, 1
        %v1368 = vsel %vm1365, %v1366, %v1367
        %v1369 = vrot.slane %v1358, 1
        %v1370 = vrot.slane %v1221, 1
        %v1371 = vsel %vm1365, %v1369, %v1370
        %v1372 = vrot.slane %v1359, 1
        %v1373 = vrot.slane %v1222, 1
        %v1374 = vsel %vm1365, %v1372, %v1373
        %v1375 = vrot.slane %v1360, 1
        %v1376 = vrot.slane %v1223, 1
        %v1377 = vsel %vm1365, %v1375, %v1376
        %v1378 = vrot.slane %v1361, 1
        %v1379 = vrot.slane %v1224, 1
        %v1380 = vsel %vm1365, %v1378, %v1379
        %v1381 = vrot.slane %v1362, 1
        %v1382 = vrot.slane %v1225, 1
        %v1383 = vsel %vm1365, %v1381, %v1382
        %v1384 = vrot.slane %v1363, 1
        %v1385 = vrot.slane %v1226, 1
        %v1386 = vsel %vm1365, %v1384, %v1385
        %v1387 = vrot.slane %v1364, 1
        %v1388 = vrot.slane %v1227, 1
        %v1389 = vsel %vm1365, %v1387, %v1388
        %1390 = vrot.lane.b32.xlu0 %v1368, 8
        %v1391 = vpop.permute.xlu0 %1390
        %1392 = vrot.lane.b32.xlu0 %v1371, 8
        %v1393 = vpop.permute.xlu0 %1392
        %1394 = vrot.lane.b32.xlu0 %v1374, 8
        %v1395 = vpop.permute.xlu0 %1394
        %1396 = vrot.lane.b32.xlu0 %v1377, 8
        %v1397 = vpop.permute.xlu0 %1396
        %1398 = vrot.lane.b32.xlu0 %v1380, 8
        %v1399 = vpop.permute.xlu0 %1398
        %1400 = vrot.lane.b32.xlu0 %v1383, 8
        %v1401 = vpop.permute.xlu0 %1400
        %1402 = vrot.lane.b32.xlu0 %v1386, 8
        %v1403 = vpop.permute.xlu0 %1402
        %1404 = vrot.lane.b32.xlu0 %v1389, 8
        %v1405 = vpop.permute.xlu0 %1404
        %vm1406 = vcmask 31744
        %v1408 = vsel %vm1406, %v1196, %v1326
        %v1410 = vsel %vm1406, %v1197, %v1328
        %v1412 = vsel %vm1406, %v1198, %v1330
        %v1414 = vsel %vm1406, %v1199, %v1332
        %v1416 = vsel %vm1406, %v1200, %v1334
        %v1418 = vsel %vm1406, %v1201, %v1336
        %v1420 = vsel %vm1406, %v1202, %v1338
        %v1422 = vsel %vm1406, %v1203, %v1340
        %vm1423 = vcmask 64512
        %v1425 = vsel %vm1423, %v1408, %v1391
        %v1427 = vsel %vm1423, %v1410, %v1393
        %v1429 = vsel %vm1423, %v1412, %v1395
        %v1431 = vsel %vm1423, %v1414, %v1397
        %v1433 = vsel %vm1423, %v1416, %v1399
        %v1435 = vsel %vm1423, %v1418, %v1401
        %v1437 = vsel %vm1423, %v1420, %v1403
        %v1439 = vsel %vm1423, %v1422, %v1405
        %v1440 = vld [vmem:[%s3] sm:$0xf]
        %v1441 = vld [vmem:[%s3 + $0x4] sm:$0x3]
        %v1442 = vld [vmem:[%s898] sm:$0xf]
        %v1443 = vld [vmem:[%s898 + $0x4] sm:$0xf]
        %v1444 = vld [vmem:[%s898 + $0xc] sm:$0xf]
        %v1445 = vld [vmem:[%s898 + $0x10] sm:$0xf]
        %v1446 = vld [vmem:[%s898 + $0x18] sm:$0xf]
        %v1447 = vld [vmem:[%s898 + $0x1c] sm:$0xf]
        %v1448 = vld [vmem:[%s898 + $0x24] sm:$0xf]
        %v1449 = vld [vmem:[%s898 + $0x28] sm:$0xf]
        %v1450 = vld [vmem:[%s898 + $0x30] sm:$0xf]
        %v1451 = vld [vmem:[%s898 + $0x34] sm:$0xf]
        %v1452 = vld [vmem:[%s898 + $0x3c] sm:$0xf]
        %v1453 = vld [vmem:[%s898 + $0x40] sm:$0xf]
        %v1454 = vld [vmem:[%s898 + $0x48] sm:$0xf]
        %v1455 = vld [vmem:[%s898 + $0x4c] sm:$0xf]
        %v1456 = vld [vmem:[%s898 + $0x54] sm:$0xf]
        %v1457 = vld [vmem:[%s898 + $0x58] sm:$0xf]
        %v1458 = vld [vmem:[%s898 + $0x8] sm:$0x1]
        %v1459 = vld [vmem:[%s898 + $0x14] sm:$0x1]
        %v1460 = vld [vmem:[%s898 + $0x20] sm:$0x1]
        %v1461 = vld [vmem:[%s898 + $0x2c] sm:$0x1]
        %v1462 = vld [vmem:[%s898 + $0x38] sm:$0x1]
        %v1463 = vld [vmem:[%s898 + $0x44] sm:$0x1]
        %v1464 = vld [vmem:[%s898 + $0x50] sm:$0x1]
        %v1465 = vld [vmem:[%s898 + $0x5c] sm:$0x1]
        %v1466 = vld [vmem:[%s898] sm:$0xe]
        %v1467 = vld [vmem:[%s898 + $0xc] sm:$0xe]
        %v1468 = vld [vmem:[%s898 + $0x18] sm:$0xe]
        %v1469 = vld [vmem:[%s898 + $0x24] sm:$0xe]
        %v1470 = vld [vmem:[%s898 + $0x30] sm:$0xe]
        %v1471 = vld [vmem:[%s898 + $0x3c] sm:$0xe]
        %v1472 = vld [vmem:[%s898 + $0x48] sm:$0xe]
        %v1473 = vld [vmem:[%s898 + $0x54] sm:$0xe]
        %v1490 = vunpack.c.l.b16 %v1442
        %v1491 = vunpack.c.l.b16 %v1443
        %v1492 = vunpack.c.l.b16 %v1444
        %v1493 = vunpack.c.l.b16 %v1445
        %v1494 = vunpack.c.l.b16 %v1446
        %v1495 = vunpack.c.l.b16 %v1447
        %v1496 = vunpack.c.l.b16 %v1448
        %v1497 = vunpack.c.l.b16 %v1449
        %v1498 = vunpack.c.l.b16 %v1450
        %v1499 = vunpack.c.l.b16 %v1451
        %v1500 = vunpack.c.l.b16 %v1452
        %v1501 = vunpack.c.l.b16 %v1453
        %v1502 = vunpack.c.l.b16 %v1454
        %v1503 = vunpack.c.l.b16 %v1455
        %v1504 = vunpack.c.l.b16 %v1456
        %v1505 = vunpack.c.l.b16 %v1457
        %v1506 = vpack.c.b16 %v1491, %v1490
        %v1507 = vpack.c.b16 %v1493, %v1492
        %v1508 = vpack.c.b16 %v1495, %v1494
        %v1509 = vpack.c.b16 %v1497, %v1496
        %v1510 = vpack.c.b16 %v1499, %v1498
        %v1511 = vpack.c.b16 %v1501, %v1500
        %v1512 = vpack.c.b16 %v1503, %v1502
        %v1513 = vpack.c.b16 %v1505, %v1504
        %v1522 = vunpack.c.l.b16 %v1458
        %v1523 = vunpack.c.l.b16 %v1459
        %v1524 = vunpack.c.l.b16 %v1460
        %v1525 = vunpack.c.l.b16 %v1461
        %v1526 = vunpack.c.l.b16 %v1462
        %v1527 = vunpack.c.l.b16 %v1463
        %v1528 = vunpack.c.l.b16 %v1464
        %v1529 = vunpack.c.l.b16 %v1465
        %v1530 = vpack.c.b16 %v1522, %v1522
        %v1531 = vpack.c.b16 %v1523, %v1523
        %v1532 = vpack.c.b16 %v1524, %v1524
        %v1533 = vpack.c.b16 %v1525, %v1525
        %v1534 = vpack.c.b16 %v1526, %v1526
        %v1535 = vpack.c.b16 %v1527, %v1527
        %v1536 = vpack.c.b16 %v1528, %v1528
        %v1537 = vpack.c.b16 %v1529, %v1529
        %v1539 = vshrl.u32 %v1506, 16
        %v1541 = vshll.u32 %v1506, 16
        %v1543 = vrot.slane %v1541, 1
        %v1544 = vor.u32 %v1539, %v1543
        %v1546 = vshll.u32 %v1530, 16
        %v1548 = vrot.slane %v1546, 1
        %v1549 = vsel %vm1228, %v1544, %v1548
        %v1551 = vshrl.u32 %v1507, 16
        %v1553 = vshll.u32 %v1507, 16
        %v1555 = vrot.slane %v1553, 1
        %v1556 = vor.u32 %v1551, %v1555
        %v1558 = vshll.u32 %v1531, 16
        %v1560 = vrot.slane %v1558, 1
        %v1561 = vsel %vm1228, %v1556, %v1560
        %v1563 = vshrl.u32 %v1508, 16
        %v1565 = vshll.u32 %v1508, 16
        %v1567 = vrot.slane %v1565, 1
        %v1568 = vor.u32 %v1563, %v1567
        %v1570 = vshll.u32 %v1532, 16
        %v1572 = vrot.slane %v1570, 1
        %v1573 = vsel %vm1228, %v1568, %v1572
        %v1575 = vshrl.u32 %v1509, 16
        %v1577 = vshll.u32 %v1509, 16
        %v1579 = vrot.slane %v1577, 1
        %v1580 = vor.u32 %v1575, %v1579
        %v1582 = vshll.u32 %v1533, 16
        %v1584 = vrot.slane %v1582, 1
        %v1585 = vsel %vm1228, %v1580, %v1584
        %v1587 = vshrl.u32 %v1510, 16
        %v1589 = vshll.u32 %v1510, 16
        %v1591 = vrot.slane %v1589, 1
        %v1592 = vor.u32 %v1587, %v1591
        %v1594 = vshll.u32 %v1534, 16
        %v1596 = vrot.slane %v1594, 1
        %v1597 = vsel %vm1228, %v1592, %v1596
        %v1599 = vshrl.u32 %v1511, 16
        %v1601 = vshll.u32 %v1511, 16
        %v1603 = vrot.slane %v1601, 1
        %v1604 = vor.u32 %v1599, %v1603
        %v1606 = vshll.u32 %v1535, 16
        %v1608 = vrot.slane %v1606, 1
        %v1609 = vsel %vm1228, %v1604, %v1608
        %v1611 = vshrl.u32 %v1512, 16
        %v1613 = vshll.u32 %v1512, 16
        %v1615 = vrot.slane %v1613, 1
        %v1616 = vor.u32 %v1611, %v1615
        %v1618 = vshll.u32 %v1536, 16
        %v1620 = vrot.slane %v1618, 1
        %v1621 = vsel %vm1228, %v1616, %v1620
        %v1623 = vshrl.u32 %v1513, 16
        %v1625 = vshll.u32 %v1513, 16
        %v1627 = vrot.slane %v1625, 1
        %v1628 = vor.u32 %v1623, %v1627
        %v1630 = vshll.u32 %v1537, 16
        %v1632 = vrot.slane %v1630, 1
        %v1633 = vsel %vm1228, %v1628, %v1632
        %1634 = vrot.lane.b32.xlu0 %v1549, 4
        %v1635 = vpop.permute.xlu0 %1634
        %1636 = vrot.lane.b32.xlu0 %v1561, 4
        %v1637 = vpop.permute.xlu0 %1636
        %1638 = vrot.lane.b32.xlu0 %v1573, 4
        %v1639 = vpop.permute.xlu0 %1638
        %1640 = vrot.lane.b32.xlu0 %v1585, 4
        %v1641 = vpop.permute.xlu0 %1640
        %1642 = vrot.lane.b32.xlu0 %v1597, 4
        %v1643 = vpop.permute.xlu0 %1642
        %1644 = vrot.lane.b32.xlu0 %v1609, 4
        %v1645 = vpop.permute.xlu0 %1644
        %1646 = vrot.lane.b32.xlu0 %v1621, 4
        %v1647 = vpop.permute.xlu0 %1646
        %1648 = vrot.lane.b32.xlu0 %v1633, 4
        %v1649 = vpop.permute.xlu0 %1648
        %v1658 = vunpack.c.l.b16 %v1466
        %v1659 = vunpack.c.l.b16 %v1467
        %v1660 = vunpack.c.l.b16 %v1468
        %v1661 = vunpack.c.l.b16 %v1469
        %v1662 = vunpack.c.l.b16 %v1470
        %v1663 = vunpack.c.l.b16 %v1471
        %v1664 = vunpack.c.l.b16 %v1472
        %v1665 = vunpack.c.l.b16 %v1473
        %v1666 = vpack.c.b16 %v1491, %v1658
        %v1667 = vpack.c.b16 %v1493, %v1659
        %v1668 = vpack.c.b16 %v1495, %v1660
        %v1669 = vpack.c.b16 %v1497, %v1661
        %v1670 = vpack.c.b16 %v1499, %v1662
        %v1671 = vpack.c.b16 %v1501, %v1663
        %v1672 = vpack.c.b16 %v1503, %v1664
        %v1673 = vpack.c.b16 %v1505, %v1665
        %v1674 = vrot.slane %v1666, 1
        %v1675 = vrot.slane %v1530, 1
        %v1676 = vsel %vm1365, %v1674, %v1675
        %v1677 = vrot.slane %v1667, 1
        %v1678 = vrot.slane %v1531, 1
        %v1679 = vsel %vm1365, %v1677, %v1678
        %v1680 = vrot.slane %v1668, 1
        %v1681 = vrot.slane %v1532, 1
        %v1682 = vsel %vm1365, %v1680, %v1681
        %v1683 = vrot.slane %v1669, 1
        %v1684 = vrot.slane %v1533, 1
        %v1685 = vsel %vm1365, %v1683, %v1684
        %v1686 = vrot.slane %v1670, 1
        %v1687 = vrot.slane %v1534, 1
        %v1688 = vsel %vm1365, %v1686, %v1687
        %v1689 = vrot.slane %v1671, 1
        %v1690 = vrot.slane %v1535, 1
        %v1691 = vsel %vm1365, %v1689, %v1690
        %v1692 = vrot.slane %v1672, 1
        %v1693 = vrot.slane %v1536, 1
        %v1694 = vsel %vm1365, %v1692, %v1693
        %v1695 = vrot.slane %v1673, 1
        %v1696 = vrot.slane %v1537, 1
        %v1697 = vsel %vm1365, %v1695, %v1696
        %1698 = vrot.lane.b32.xlu0 %v1676, 8
        %v1699 = vpop.permute.xlu0 %1698
        %1700 = vrot.lane.b32.xlu0 %v1679, 8
        %v1701 = vpop.permute.xlu0 %1700
        %1702 = vrot.lane.b32.xlu0 %v1682, 8
        %v1703 = vpop.permute.xlu0 %1702
        %1704 = vrot.lane.b32.xlu0 %v1685, 8
        %v1705 = vpop.permute.xlu0 %1704
        %1706 = vrot.lane.b32.xlu0 %v1688, 8
        %v1707 = vpop.permute.xlu0 %1706
        %1708 = vrot.lane.b32.xlu0 %v1691, 8
        %v1709 = vpop.permute.xlu0 %1708
        %1710 = vrot.lane.b32.xlu0 %v1694, 8
        %v1711 = vpop.permute.xlu0 %1710
        %1712 = vrot.lane.b32.xlu0 %v1697, 8
        %v1713 = vpop.permute.xlu0 %1712
        %v1715 = vsel %vm1406, %v1506, %v1635
        %v1717 = vsel %vm1406, %v1507, %v1637
        %v1719 = vsel %vm1406, %v1508, %v1639
        %v1721 = vsel %vm1406, %v1509, %v1641
        %v1723 = vsel %vm1406, %v1510, %v1643
        %v1725 = vsel %vm1406, %v1511, %v1645
        %v1727 = vsel %vm1406, %v1512, %v1647
        %v1729 = vsel %vm1406, %v1513, %v1649
        %v1731 = vsel %vm1423, %v1715, %v1699
        %v1733 = vsel %vm1423, %v1717, %v1701
        %v1735 = vsel %vm1423, %v1719, %v1703
        %v1737 = vsel %vm1423, %v1721, %v1705
        %v1739 = vsel %vm1423, %v1723, %v1707
        %v1741 = vsel %vm1423, %v1725, %v1709
        %v1743 = vsel %vm1423, %v1727, %v1711
        %v1745 = vsel %vm1423, %v1729, %v1713
        %s1746 = scalar_lea.vmem %s3, 8
        %v1747 = vld [vmem:[%s1746] sm:$0xf]
        %v1748 = vld [vmem:[%s1746 + $0x4] sm:$0x3]
        %v1751 = vunpack.c.l.b16 %v1747
        %v1752 = vunpack.c.l.b16 %v1748
        %v1753 = vpack.c.b16 %v1752, %v1751
        %vm1754 = vcmask 97280
        %v1755 = vsel %vm1754, %v1731, 0
        %v1757 = vsel %vm1754, %v1733, 0
        %v1759 = vsel %vm1754, %v1735, 0
        %v1761 = vsel %vm1754, %v1737, 0
        %v1763 = vsel %vm1754, %v1739, 0
        %v1765 = vsel %vm1754, %v1741, 0
        %v1767 = vsel %vm1754, %v1743, 0
        %v1769 = vsel %vm1754, %v1745, 0
        %vm1771 = vcmask 1045504
        %v1773 = vsel %vm1771, %v1753, 0
        %1775 = vmatpush.bf16.msra.mxu0 0
        %1776 = vmatpush.bf16.msra.mxu0 0
        %1777 = vmatpush.bf16.msra.mxu0 0
        %1778 = vmatpush.bf16.msra.mxu0 0
        %1779 = vmatpush.bf16.msra.mxu0 0
        %1780 = vmatpush.bf16.msra.mxu0 0
        %1781 = vmatpush.bf16.msra.mxu0 0
        %1782 = vmatpush.bf16.msra.mxu0 %v1773
        %1783 = vmatmul.bf16.gmra.mxu0 %v1755
        %v1784 = vpop.f32.mrf.mxu0
        %v1785 = vadd.f32 0.0, %v1784
        %v1786 = vpop.f32.mrf.mxu0
        %v1787 = vadd.f32 0.0, %v1786
        %1788 = vmatmul.bf16.gmra.mxu0 %v1757
        %v1789 = vpop.f32.mrf.mxu0
        %v1790 = vadd.f32 0.0, %v1789
        %v1791 = vpop.f32.mrf.mxu0
        %v1792 = vadd.f32 0.0, %v1791
        %1793 = vmatmul.bf16.gmra.mxu0 %v1759
        %v1794 = vpop.f32.mrf.mxu0
        %v1795 = vadd.f32 0.0, %v1794
        %v1796 = vpop.f32.mrf.mxu0
        %v1797 = vadd.f32 0.0, %v1796
        %1798 = vmatmul.bf16.gmra.mxu0 %v1761
        %v1799 = vpop.f32.mrf.mxu0
        %v1800 = vadd.f32 0.0, %v1799
        %v1801 = vpop.f32.mrf.mxu0
        %v1802 = vadd.f32 0.0, %v1801
        %1803 = vmatmul.bf16.gmra.mxu0 %v1763
        %v1804 = vpop.f32.mrf.mxu0
        %v1805 = vadd.f32 0.0, %v1804
        %v1806 = vpop.f32.mrf.mxu0
        %v1807 = vadd.f32 0.0, %v1806
        %1808 = vmatmul.bf16.gmra.mxu0 %v1765
        %v1809 = vpop.f32.mrf.mxu0
        %v1810 = vadd.f32 0.0, %v1809
        %v1811 = vpop.f32.mrf.mxu0
        %v1812 = vadd.f32 0.0, %v1811
        %1813 = vmatmul.bf16.gmra.mxu0 %v1767
        %v1814 = vpop.f32.mrf.mxu0
        %v1815 = vadd.f32 0.0, %v1814
        %v1816 = vpop.f32.mrf.mxu0
        %v1817 = vadd.f32 0.0, %v1816
        %1818 = vmatmul.bf16.gmra.mxu0 %v1769
        %v1819 = vpop.f32.mrf.mxu0
        %v1820 = vadd.f32 0.0, %v1819
        %v1821 = vpop.f32.mrf.mxu0
        %v1822 = vadd.f32 0.0, %v1821
        %1823 = vdwg.mxu0
        %v1826 = vunpack.c.l.b16 %v1440
        %v1827 = vunpack.c.l.b16 %v1441
        %v1828 = vpack.c.b16 %v1827, %v1826
        %v1829 = vsel %vm1754, %v1425, 0
        %v1831 = vsel %vm1754, %v1427, 0
        %v1833 = vsel %vm1754, %v1429, 0
        %v1835 = vsel %vm1754, %v1431, 0
        %v1837 = vsel %vm1754, %v1433, 0
        %v1839 = vsel %vm1754, %v1435, 0
        %v1841 = vsel %vm1754, %v1437, 0
        %v1843 = vsel %vm1754, %v1439, 0
        %v1846 = vsel %vm1771, %v1828, 0
        %1848 = vmatpush.bf16.msra.mxu0 0
        %1849 = vmatpush.bf16.msra.mxu0 0
        %1850 = vmatpush.bf16.msra.mxu0 0
        %1851 = vmatpush.bf16.msra.mxu0 0
        %1852 = vmatpush.bf16.msra.mxu0 0
        %1853 = vmatpush.bf16.msra.mxu0 0
        %1854 = vmatpush.bf16.msra.mxu0 0
        %1855 = vmatpush.bf16.msra.mxu0 %v1846
        %1856 = vmatmul.bf16.gmra.mxu0 %v1829
        %v1857 = vpop.f32.mrf.mxu0
        %v1858 = vadd.f32 %v1785, %v1857
        %v1859 = vpop.f32.mrf.mxu0
        %v1860 = vadd.f32 %v1787, %v1859
        %1861 = vmatmul.bf16.gmra.mxu0 %v1831
        %v1862 = vpop.f32.mrf.mxu0
        %v1863 = vadd.f32 %v1790, %v1862
        %v1864 = vpop.f32.mrf.mxu0
        %v1865 = vadd.f32 %v1792, %v1864
        %1866 = vmatmul.bf16.gmra.mxu0 %v1833
        %v1867 = vpop.f32.mrf.mxu0
        %v1868 = vadd.f32 %v1795, %v1867
        %v1869 = vpop.f32.mrf.mxu0
        %v1870 = vadd.f32 %v1797, %v1869
        %1871 = vmatmul.bf16.gmra.mxu0 %v1835
        %v1872 = vpop.f32.mrf.mxu0
        %v1873 = vadd.f32 %v1800, %v1872
        %v1874 = vpop.f32.mrf.mxu0
        %v1875 = vadd.f32 %v1802, %v1874
        %1876 = vmatmul.bf16.gmra.mxu0 %v1837
        %v1877 = vpop.f32.mrf.mxu0
        %v1878 = vadd.f32 %v1805, %v1877
        %v1879 = vpop.f32.mrf.mxu0
        %v1880 = vadd.f32 %v1807, %v1879
        %1881 = vmatmul.bf16.gmra.mxu0 %v1839
        %v1882 = vpop.f32.mrf.mxu0
        %v1883 = vadd.f32 %v1810, %v1882
        %v1884 = vpop.f32.mrf.mxu0
        %v1885 = vadd.f32 %v1812, %v1884
        %1886 = vmatmul.bf16.gmra.mxu0 %v1841
        %v1887 = vpop.f32.mrf.mxu0
        %v1888 = vadd.f32 %v1815, %v1887
        %v1889 = vpop.f32.mrf.mxu0
        %v1890 = vadd.f32 %v1817, %v1889
        %1891 = vmatmul.bf16.gmra.mxu0 %v1843
        %v1892 = vpop.f32.mrf.mxu0
        %v1893 = vadd.f32 %v1820, %v1892
        %v1894 = vpop.f32.mrf.mxu0
        %v1895 = vadd.f32 %v1822, %v1894
        %1896 = vdwg.mxu0
        %s1897 = scalar_lea.vmem [#allocation2], 24
        %v1898 = vld [vmem:[%s1897] sm:$0xf]
        %v1899 = vld [vmem:[%s1897 + $0x4] sm:$0xf]
        %v1900 = vld [vmem:[%s1897 + $0xc] sm:$0xf]
        %v1901 = vld [vmem:[%s1897 + $0x10] sm:$0xf]
        %v1902 = vld [vmem:[%s1897 + $0x18] sm:$0xf]
        %v1903 = vld [vmem:[%s1897 + $0x1c] sm:$0xf]
        %v1904 = vld [vmem:[%s1897 + $0x24] sm:$0xf]
        %v1905 = vld [vmem:[%s1897 + $0x28] sm:$0xf]
        %v1906 = vld [vmem:[%s1897 + $0x30] sm:$0xf]
        %v1907 = vld [vmem:[%s1897 + $0x34] sm:$0xf]
        %v1908 = vld [vmem:[%s1897 + $0x3c] sm:$0xf]
        %v1909 = vld [vmem:[%s1897 + $0x40] sm:$0xf]
        %v1910 = vld [vmem:[%s1897 + $0x48] sm:$0xf]
        %v1911 = vld [vmem:[%s1897 + $0x4c] sm:$0xf]
        %v1912 = vld [vmem:[%s1897 + $0x54] sm:$0xf]
        %v1913 = vld [vmem:[%s1897 + $0x58] sm:$0xf]
        %v1914 = vld [vmem:[%s1897 + $0x8] sm:$0x1]
        %v1915 = vld [vmem:[%s1897 + $0x14] sm:$0x1]
        %v1916 = vld [vmem:[%s1897 + $0x20] sm:$0x1]
        %v1917 = vld [vmem:[%s1897 + $0x2c] sm:$0x1]
        %v1918 = vld [vmem:[%s1897 + $0x38] sm:$0x1]
        %v1919 = vld [vmem:[%s1897 + $0x44] sm:$0x1]
        %v1920 = vld [vmem:[%s1897 + $0x50] sm:$0x1]
        %v1921 = vld [vmem:[%s1897 + $0x5c] sm:$0x1]
        %v1922 = vld [vmem:[%s1897] sm:$0xe]
        %v1923 = vld [vmem:[%s1897 + $0xc] sm:$0xe]
        %v1924 = vld [vmem:[%s1897 + $0x18] sm:$0xe]
        %v1925 = vld [vmem:[%s1897 + $0x24] sm:$0xe]
        %v1926 = vld [vmem:[%s1897 + $0x30] sm:$0xe]
        %v1927 = vld [vmem:[%s1897 + $0x3c] sm:$0xe]
        %v1928 = vld [vmem:[%s1897 + $0x48] sm:$0xe]
        %v1929 = vld [vmem:[%s1897 + $0x54] sm:$0xe]
        %v1946 = vunpack.c.l.b16 %v1898
        %v1947 = vunpack.c.l.b16 %v1899
        %v1948 = vunpack.c.l.b16 %v1900
        %v1949 = vunpack.c.l.b16 %v1901
        %v1950 = vunpack.c.l.b16 %v1902
        %v1951 = vunpack.c.l.b16 %v1903
        %v1952 = vunpack.c.l.b16 %v1904
        %v1953 = vunpack.c.l.b16 %v1905
        %v1954 = vunpack.c.l.b16 %v1906
        %v1955 = vunpack.c.l.b16 %v1907
        %v1956 = vunpack.c.l.b16 %v1908
        %v1957 = vunpack.c.l.b16 %v1909
        %v1958 = vunpack.c.l.b16 %v1910
        %v1959 = vunpack.c.l.b16 %v1911
        %v1960 = vunpack.c.l.b16 %v1912
        %v1961 = vunpack.c.l.b16 %v1913
        %v1962 = vpack.c.b16 %v1947, %v1946
        %v1963 = vpack.c.b16 %v1949, %v1948
        %v1964 = vpack.c.b16 %v1951, %v1950
        %v1965 = vpack.c.b16 %v1953, %v1952
        %v1966 = vpack.c.b16 %v1955, %v1954
        %v1967 = vpack.c.b16 %v1957, %v1956
        %v1968 = vpack.c.b16 %v1959, %v1958
        %v1969 = vpack.c.b16 %v1961, %v1960
        %v1978 = vunpack.c.l.b16 %v1914
        %v1979 = vunpack.c.l.b16 %v1915
        %v1980 = vunpack.c.l.b16 %v1916
        %v1981 = vunpack.c.l.b16 %v1917
        %v1982 = vunpack.c.l.b16 %v1918
        %v1983 = vunpack.c.l.b16 %v1919
        %v1984 = vunpack.c.l.b16 %v1920
        %v1985 = vunpack.c.l.b16 %v1921
        %v1986 = vpack.c.b16 %v1978, %v1978
        %v1987 = vpack.c.b16 %v1979, %v1979
        %v1988 = vpack.c.b16 %v1980, %v1980
        %v1989 = vpack.c.b16 %v1981, %v1981
        %v1990 = vpack.c.b16 %v1982, %v1982
        %v1991 = vpack.c.b16 %v1983, %v1983
        %v1992 = vpack.c.b16 %v1984, %v1984
        %v1993 = vpack.c.b16 %v1985, %v1985
        %v1995 = vshrl.u32 %v1962, 16
        %v1997 = vshll.u32 %v1962, 16
        %v1999 = vrot.slane %v1997, 1
        %v2000 = vor.u32 %v1995, %v1999
        %v2002 = vshll.u32 %v1986, 16
        %v2004 = vrot.slane %v2002, 1
        %v2005 = vsel %vm1228, %v2000, %v2004
        %v2007 = vshrl.u32 %v1963, 16
        %v2009 = vshll.u32 %v1963, 16
        %v2011 = vrot.slane %v2009, 1
        %v2012 = vor.u32 %v2007, %v2011
        %v2014 = vshll.u32 %v1987, 16
        %v2016 = vrot.slane %v2014, 1
        %v2017 = vsel %vm1228, %v2012, %v2016
        %v2019 = vshrl.u32 %v1964, 16
        %v2021 = vshll.u32 %v1964, 16
        %v2023 = vrot.slane %v2021, 1
        %v2024 = vor.u32 %v2019, %v2023
        %v2026 = vshll.u32 %v1988, 16
        %v2028 = vrot.slane %v2026, 1
        %v2029 = vsel %vm1228, %v2024, %v2028
        %v2031 = vshrl.u32 %v1965, 16
        %v2033 = vshll.u32 %v1965, 16
        %v2035 = vrot.slane %v2033, 1
        %v2036 = vor.u32 %v2031, %v2035
        %v2038 = vshll.u32 %v1989, 16
        %v2040 = vrot.slane %v2038, 1
        %v2041 = vsel %vm1228, %v2036, %v2040
        %v2043 = vshrl.u32 %v1966, 16
        %v2045 = vshll.u32 %v1966, 16
        %v2047 = vrot.slane %v2045, 1
        %v2048 = vor.u32 %v2043, %v2047
        %v2050 = vshll.u32 %v1990, 16
        %v2052 = vrot.slane %v2050, 1
        %v2053 = vsel %vm1228, %v2048, %v2052
        %v2055 = vshrl.u32 %v1967, 16
        %v2057 = vshll.u32 %v1967, 16
        %v2059 = vrot.slane %v2057, 1
        %v2060 = vor.u32 %v2055, %v2059
        %v2062 = vshll.u32 %v1991, 16
        %v2064 = vrot.slane %v2062, 1
        %v2065 = vsel %vm1228, %v2060, %v2064
        %v2067 = vshrl.u32 %v1968, 16
        %v2069 = vshll.u32 %v1968, 16
        %v2071 = vrot.slane %v2069, 1
        %v2072 = vor.u32 %v2067, %v2071
        %v2074 = vshll.u32 %v1992, 16
        %v2076 = vrot.slane %v2074, 1
        %v2077 = vsel %vm1228, %v2072, %v2076
        %v2079 = vshrl.u32 %v1969, 16
        %v2081 = vshll.u32 %v1969, 16
        %v2083 = vrot.slane %v2081, 1
        %v2084 = vor.u32 %v2079, %v2083
        %v2086 = vshll.u32 %v1993, 16
        %v2088 = vrot.slane %v2086, 1
        %v2089 = vsel %vm1228, %v2084, %v2088
        %2090 = vrot.lane.b32.xlu0 %v2005, 4
        %v2091 = vpop.permute.xlu0 %2090
        %2092 = vrot.lane.b32.xlu0 %v2017, 4
        %v2093 = vpop.permute.xlu0 %2092
        %2094 = vrot.lane.b32.xlu0 %v2029, 4
        %v2095 = vpop.permute.xlu0 %2094
        %2096 = vrot.lane.b32.xlu0 %v2041, 4
        %v2097 = vpop.permute.xlu0 %2096
        %2098 = vrot.lane.b32.xlu0 %v2053, 4
        %v2099 = vpop.permute.xlu0 %2098
        %2100 = vrot.lane.b32.xlu0 %v2065, 4
        %v2101 = vpop.permute.xlu0 %2100
        %2102 = vrot.lane.b32.xlu0 %v2077, 4
        %v2103 = vpop.permute.xlu0 %2102
        %2104 = vrot.lane.b32.xlu0 %v2089, 4
        %v2105 = vpop.permute.xlu0 %2104
        %v2114 = vunpack.c.l.b16 %v1922
        %v2115 = vunpack.c.l.b16 %v1923
        %v2116 = vunpack.c.l.b16 %v1924
        %v2117 = vunpack.c.l.b16 %v1925
        %v2118 = vunpack.c.l.b16 %v1926
        %v2119 = vunpack.c.l.b16 %v1927
        %v2120 = vunpack.c.l.b16 %v1928
        %v2121 = vunpack.c.l.b16 %v1929
        %v2122 = vpack.c.b16 %v1947, %v2114
        %v2123 = vpack.c.b16 %v1949, %v2115
        %v2124 = vpack.c.b16 %v1951, %v2116
        %v2125 = vpack.c.b16 %v1953, %v2117
        %v2126 = vpack.c.b16 %v1955, %v2118
        %v2127 = vpack.c.b16 %v1957, %v2119
        %v2128 = vpack.c.b16 %v1959, %v2120
        %v2129 = vpack.c.b16 %v1961, %v2121
        %v2130 = vrot.slane %v2122, 1
        %v2131 = vrot.slane %v1986, 1
        %v2132 = vsel %vm1365, %v2130, %v2131
        %v2133 = vrot.slane %v2123, 1
        %v2134 = vrot.slane %v1987, 1
        %v2135 = vsel %vm1365, %v2133, %v2134
        %v2136 = vrot.slane %v2124, 1
        %v2137 = vrot.slane %v1988, 1
        %v2138 = vsel %vm1365, %v2136, %v2137
        %v2139 = vrot.slane %v2125, 1
        %v2140 = vrot.slane %v1989, 1
        %v2141 = vsel %vm1365, %v2139, %v2140
        %v2142 = vrot.slane %v2126, 1
        %v2143 = vrot.slane %v1990, 1
        %v2144 = vsel %vm1365, %v2142, %v2143
        %v2145 = vrot.slane %v2127, 1
        %v2146 = vrot.slane %v1991, 1
        %v2147 = vsel %vm1365, %v2145, %v2146
        %v2148 = vrot.slane %v2128, 1
        %v2149 = vrot.slane %v1992, 1
        %v2150 = vsel %vm1365, %v2148, %v2149
        %v2151 = vrot.slane %v2129, 1
        %v2152 = vrot.slane %v1993, 1
        %v2153 = vsel %vm1365, %v2151, %v2152
        %2154 = vrot.lane.b32.xlu0 %v2132, 8
        %v2155 = vpop.permute.xlu0 %2154
        %2156 = vrot.lane.b32.xlu0 %v2135, 8
        %v2157 = vpop.permute.xlu0 %2156
        %2158 = vrot.lane.b32.xlu0 %v2138, 8
        %v2159 = vpop.permute.xlu0 %2158
        %2160 = vrot.lane.b32.xlu0 %v2141, 8
        %v2161 = vpop.permute.xlu0 %2160
        %2162 = vrot.lane.b32.xlu0 %v2144, 8
        %v2163 = vpop.permute.xlu0 %2162
        %2164 = vrot.lane.b32.xlu0 %v2147, 8
        %v2165 = vpop.permute.xlu0 %2164
        %2166 = vrot.lane.b32.xlu0 %v2150, 8
        %v2167 = vpop.permute.xlu0 %2166
        %2168 = vrot.lane.b32.xlu0 %v2153, 8
        %v2169 = vpop.permute.xlu0 %2168
        %v2171 = vsel %vm1406, %v1962, %v2091
        %v2173 = vsel %vm1406, %v1963, %v2093
        %v2175 = vsel %vm1406, %v1964, %v2095
        %v2177 = vsel %vm1406, %v1965, %v2097
        %v2179 = vsel %vm1406, %v1966, %v2099
        %v2181 = vsel %vm1406, %v1967, %v2101
        %v2183 = vsel %vm1406, %v1968, %v2103
        %v2185 = vsel %vm1406, %v1969, %v2105
        %v2187 = vsel %vm1423, %v2171, %v2155
        %v2189 = vsel %vm1423, %v2173, %v2157
        %v2191 = vsel %vm1423, %v2175, %v2159
        %v2193 = vsel %vm1423, %v2177, %v2161
        %v2195 = vsel %vm1423, %v2179, %v2163
        %v2197 = vsel %vm1423, %v2181, %v2165
        %v2199 = vsel %vm1423, %v2183, %v2167
        %v2201 = vsel %vm1423, %v2185, %v2169
        %s2202 = scalar_lea.vmem %s3, 16
        %v2203 = vld [vmem:[%s2202] sm:$0xf]
        %v2204 = vld [vmem:[%s2202 + $0x4] sm:$0x3]
        %v2207 = vunpack.c.l.b16 %v2203
        %v2208 = vunpack.c.l.b16 %v2204
        %v2209 = vpack.c.b16 %v2208, %v2207
        %v2210 = vsel %vm1754, %v2187, 0
        %v2212 = vsel %vm1754, %v2189, 0
        %v2214 = vsel %vm1754, %v2191, 0
        %v2216 = vsel %vm1754, %v2193, 0
        %v2218 = vsel %vm1754, %v2195, 0
        %v2220 = vsel %vm1754, %v2197, 0
        %v2222 = vsel %vm1754, %v2199, 0
        %v2224 = vsel %vm1754, %v2201, 0
        %v2227 = vsel %vm1771, %v2209, 0
        %2229 = vmatpush.bf16.msra.mxu0 0
        %2230 = vmatpush.bf16.msra.mxu0 0
        %2231 = vmatpush.bf16.msra.mxu0 0
        %2232 = vmatpush.bf16.msra.mxu0 0
        %2233 = vmatpush.bf16.msra.mxu0 0
        %2234 = vmatpush.bf16.msra.mxu0 0
        %2235 = vmatpush.bf16.msra.mxu0 0
        %2236 = vmatpush.bf16.msra.mxu0 %v2227
        %2237 = vmatmul.bf16.gmra.mxu0 %v2210
        %v2238 = vpop.f32.mrf.mxu0
        %v2239 = vadd.f32 0.0, %v2238
        %v2240 = vpop.f32.mrf.mxu0
        %v2241 = vadd.f32 0.0, %v2240
        %2242 = vmatmul.bf16.gmra.mxu0 %v2212
        %v2243 = vpop.f32.mrf.mxu0
        %v2244 = vadd.f32 0.0, %v2243
        %v2245 = vpop.f32.mrf.mxu0
        %v2246 = vadd.f32 0.0, %v2245
        %2247 = vmatmul.bf16.gmra.mxu0 %v2214
        %v2248 = vpop.f32.mrf.mxu0
        %v2249 = vadd.f32 0.0, %v2248
        %v2250 = vpop.f32.mrf.mxu0
        %v2251 = vadd.f32 0.0, %v2250
        %2252 = vmatmul.bf16.gmra.mxu0 %v2216
        %v2253 = vpop.f32.mrf.mxu0
        %v2254 = vadd.f32 0.0, %v2253
        %v2255 = vpop.f32.mrf.mxu0
        %v2256 = vadd.f32 0.0, %v2255
        %2257 = vmatmul.bf16.gmra.mxu0 %v2218
        %v2258 = vpop.f32.mrf.mxu0
        %v2259 = vadd.f32 0.0, %v2258
        %v2260 = vpop.f32.mrf.mxu0
        %v2261 = vadd.f32 0.0, %v2260
        %2262 = vmatmul.bf16.gmra.mxu0 %v2220
        %v2263 = vpop.f32.mrf.mxu0
        %v2264 = vadd.f32 0.0, %v2263
        %v2265 = vpop.f32.mrf.mxu0
        %v2266 = vadd.f32 0.0, %v2265
        %2267 = vmatmul.bf16.gmra.mxu0 %v2222
        %v2268 = vpop.f32.mrf.mxu0
        %v2269 = vadd.f32 0.0, %v2268
        %v2270 = vpop.f32.mrf.mxu0
        %v2271 = vadd.f32 0.0, %v2270
        %2272 = vmatmul.bf16.gmra.mxu0 %v2224
        %v2273 = vpop.f32.mrf.mxu0
        %v2274 = vadd.f32 0.0, %v2273
        %v2275 = vpop.f32.mrf.mxu0
        %v2276 = vadd.f32 0.0, %v2275
        %2277 = vdwg.mxu0
        %v2278 = vadd.f32 %v1858, %v2239
        %v2279 = vadd.f32 %v1860, %v2241
        %v2280 = vadd.f32 %v1863, %v2244
        %v2281 = vadd.f32 %v1865, %v2246
        %v2282 = vadd.f32 %v1868, %v2249
        %v2283 = vadd.f32 %v1870, %v2251
        %v2284 = vadd.f32 %v1873, %v2254
        %v2285 = vadd.f32 %v1875, %v2256
        %v2286 = vadd.f32 %v1878, %v2259
        %v2287 = vadd.f32 %v1880, %v2261
        %v2288 = vadd.f32 %v1883, %v2264
        %v2289 = vadd.f32 %v1885, %v2266
        %v2290 = vadd.f32 %v1888, %v2269
        %v2291 = vadd.f32 %v1890, %v2271
        %v2292 = vadd.f32 %v1893, %v2274
        %v2293 = vadd.f32 %v1895, %v2276
        %v2295 = vperm.slane %v459, 0
        %v2297 = vmul.f32 %v2278, %v2295
        %v2298 = vmul.f32 %v2279, %v2295
        %v2299 = vmul.f32 %v2280, %v2295
        %v2300 = vmul.f32 %v2281, %v2295
        %v2301 = vmul.f32 %v2282, %v2295
        %v2302 = vmul.f32 %v2283, %v2295
        %v2303 = vmul.f32 %v2284, %v2295
        %v2304 = vmul.f32 %v2285, %v2295
        %v2305 = vmul.f32 %v2286, %v2295
        %v2306 = vmul.f32 %v2287, %v2295
        %v2307 = vmul.f32 %v2288, %v2295
        %v2308 = vmul.f32 %v2289, %v2295
        %v2309 = vmul.f32 %v2290, %v2295
        %v2310 = vmul.f32 %v2291, %v2295
        %v2311 = vmul.f32 %v2292, %v2295
        %v2312 = vmul.f32 %v2293, %v2295
        %v2314 = vperm.slane %v460, 0
        %v2316 = vadd.f32 %v2297, %v2314
        %v2317 = vadd.f32 %v2298, %v2314
        %v2318 = vadd.f32 %v2299, %v2314
        %v2319 = vadd.f32 %v2300, %v2314
        %v2320 = vadd.f32 %v2301, %v2314
        %v2321 = vadd.f32 %v2302, %v2314
        %v2322 = vadd.f32 %v2303, %v2314
        %v2323 = vadd.f32 %v2304, %v2314
        %v2324 = vadd.f32 %v2305, %v2314
        %v2325 = vadd.f32 %v2306, %v2314
        %v2326 = vadd.f32 %v2307, %v2314
        %v2327 = vadd.f32 %v2308, %v2314
        %v2328 = vadd.f32 %v2309, %v2314
        %v2329 = vadd.f32 %v2310, %v2314
        %v2330 = vadd.f32 %v2311, %v2314
        %v2331 = vadd.f32 %v2312, %v2314
        %v2332 = vmax.f32 %v2316, 0.0
        %v2333 = vmax.f32 %v2317, 0.0
        %v2334 = vmax.f32 %v2318, 0.0
        %v2335 = vmax.f32 %v2319, 0.0
        %v2336 = vmax.f32 %v2320, 0.0
        %v2337 = vmax.f32 %v2321, 0.0
        %v2338 = vmax.f32 %v2322, 0.0
        %v2339 = vmax.f32 %v2323, 0.0
        %v2340 = vmax.f32 %v2324, 0.0
        %v2341 = vmax.f32 %v2325, 0.0
        %v2342 = vmax.f32 %v2326, 0.0
        %v2343 = vmax.f32 %v2327, 0.0
        %v2344 = vmax.f32 %v2328, 0.0
        %v2345 = vmax.f32 %v2329, 0.0
        %v2346 = vmax.f32 %v2330, 0.0
        %v2347 = vmax.f32 %v2331, 0.0
        %v2348 = vpack.c.bf16 %v2333, %v2332
        %v2349 = vpack.c.bf16 %v2335, %v2334
        %v2350 = vpack.c.bf16 %v2337, %v2336
        %v2351 = vpack.c.bf16 %v2339, %v2338
        %v2352 = vpack.c.bf16 %v2341, %v2340
        %v2353 = vpack.c.bf16 %v2343, %v2342
        %v2354 = vpack.c.bf16 %v2345, %v2344
        %v2355 = vpack.c.bf16 %v2347, %v2346
        %v2356 = vld [vmem:[%s4] sm:$0x3]
        %v2358 = vsel %vm1406, %v2348, 0
        %v2361 = vsel %vm1406, %v2349, 0
        %v2364 = vsel %vm1406, %v2350, 0
        %v2367 = vsel %vm1406, %v2351, 0
        %v2370 = vsel %vm1406, %v2352, 0
        %v2373 = vsel %vm1406, %v2353, 0
        %v2376 = vsel %vm1406, %v2354, 0
        %v2379 = vsel %vm1406, %v2355, 0
        %vm2381 = vcmask 1041408
        %v2383 = vsel %vm2381, %v2356, 0
        %2385 = vmatpush.bf16.msra.mxu0 0
        %2386 = vmatpush.bf16.msra.mxu0 0
        %2387 = vmatpush.bf16.msra.mxu0 0
        %2388 = vmatpush.bf16.msra.mxu0 0
        %2389 = vmatpush.bf16.msra.mxu0 0
        %2390 = vmatpush.bf16.msra.mxu0 0
        %2391 = vmatpush.bf16.msra.mxu0 0
        %2392 = vmatpush.bf16.msra.mxu0 %v2383
        %2393 = vmatmul.bf16.gmra.mxu0 %v2358
        %v2394 = vpop.f32.mrf.mxu0
        %v2395 = vadd.f32 0.0, %v2394
        %v2396 = vpop.f32.mrf.mxu0
        %v2397 = vadd.f32 0.0, %v2396
        %2398 = vmatmul.bf16.gmra.mxu0 %v2361
        %v2399 = vpop.f32.mrf.mxu0
        %v2400 = vadd.f32 0.0, %v2399
        %v2401 = vpop.f32.mrf.mxu0
        %v2402 = vadd.f32 0.0, %v2401
        %2403 = vmatmul.bf16.gmra.mxu0 %v2364
        %v2404 = vpop.f32.mrf.mxu0
        %v2405 = vadd.f32 0.0, %v2404
        %v2406 = vpop.f32.mrf.mxu0
        %v2407 = vadd.f32 0.0, %v2406
        %2408 = vmatmul.bf16.gmra.mxu0 %v2367
        %v2409 = vpop.f32.mrf.mxu0
        %v2410 = vadd.f32 0.0, %v2409
        %v2411 = vpop.f32.mrf.mxu0
        %v2412 = vadd.f32 0.0, %v2411
        %2413 = vmatmul.bf16.gmra.mxu0 %v2370
        %v2414 = vpop.f32.mrf.mxu0
        %v2415 = vadd.f32 0.0, %v2414
        %v2416 = vpop.f32.mrf.mxu0
        %v2417 = vadd.f32 0.0, %v2416
        %2418 = vmatmul.bf16.gmra.mxu0 %v2373
        %v2419 = vpop.f32.mrf.mxu0
        %v2420 = vadd.f32 0.0, %v2419
        %v2421 = vpop.f32.mrf.mxu0
        %v2422 = vadd.f32 0.0, %v2421
        %2423 = vmatmul.bf16.gmra.mxu0 %v2376
        %v2424 = vpop.f32.mrf.mxu0
        %v2425 = vadd.f32 0.0, %v2424
        %v2426 = vpop.f32.mrf.mxu0
        %v2427 = vadd.f32 0.0, %v2426
        %2428 = vmatmul.bf16.gmra.mxu0 %v2379
        %v2429 = vpop.f32.mrf.mxu0
        %v2430 = vadd.f32 0.0, %v2429
        %v2431 = vpop.f32.mrf.mxu0
        %v2432 = vadd.f32 0.0, %v2431
        %2433 = vdwg.mxu0
        %v2434 = vld [vmem:[%s362] sm:$0xf]
        %v2435 = vld [vmem:[%s362 + $0x4] sm:$0xf]
        %v2436 = vld [vmem:[%s362 + $0x8] sm:$0xf]
        %v2437 = vld [vmem:[%s362 + $0xc] sm:$0xf]
        %v2438 = vld [vmem:[%s362 + $0x10] sm:$0xf]
        %v2439 = vld [vmem:[%s362 + $0x14] sm:$0xf]
        %v2440 = vld [vmem:[%s362 + $0x18] sm:$0xf]
        %v2441 = vld [vmem:[%s362 + $0x1c] sm:$0xf]
        %v2442 = vld [vmem:[%s362 + $0x20] sm:$0xf]
        %v2443 = vld [vmem:[%s362 + $0x24] sm:$0xf]
        %v2444 = vld [vmem:[%s362 + $0x28] sm:$0xf]
        %v2445 = vld [vmem:[%s362 + $0x2c] sm:$0xf]
        %v2446 = vld [vmem:[%s362 + $0x30] sm:$0xf]
        %v2447 = vld [vmem:[%s362 + $0x34] sm:$0xf]
        %v2448 = vld [vmem:[%s362 + $0x38] sm:$0xf]
        %v2449 = vld [vmem:[%s362 + $0x3c] sm:$0xf]
        %v2450 = vunpack.c.l.bf16 %v2434
        %v2451 = vunpack.c.l.bf16 %v2435
        %v2452 = vunpack.c.l.bf16 %v2436
        %v2453 = vunpack.c.l.bf16 %v2437
        %v2454 = vunpack.c.l.bf16 %v2438
        %v2455 = vunpack.c.l.bf16 %v2439
        %v2456 = vunpack.c.l.bf16 %v2440
        %v2457 = vunpack.c.l.bf16 %v2441
        %v2458 = vunpack.c.l.bf16 %v2442
        %v2459 = vunpack.c.l.bf16 %v2443
        %v2460 = vunpack.c.l.bf16 %v2444
        %v2461 = vunpack.c.l.bf16 %v2445
        %v2462 = vunpack.c.l.bf16 %v2446
        %v2463 = vunpack.c.l.bf16 %v2447
        %v2464 = vunpack.c.l.bf16 %v2448
        %v2465 = vunpack.c.l.bf16 %v2449
        %v2467 = vperm.slane %v461, 0
        %v2469 = vmul.f32 %v2395, %v2467
        %v2470 = vmul.f32 %v2397, %v2467
        %v2471 = vmul.f32 %v2400, %v2467
        %v2472 = vmul.f32 %v2402, %v2467
        %v2473 = vmul.f32 %v2405, %v2467
        %v2474 = vmul.f32 %v2407, %v2467
        %v2475 = vmul.f32 %v2410, %v2467
        %v2476 = vmul.f32 %v2412, %v2467
        %v2477 = vmul.f32 %v2415, %v2467
        %v2478 = vmul.f32 %v2417, %v2467
        %v2479 = vmul.f32 %v2420, %v2467
        %v2480 = vmul.f32 %v2422, %v2467
        %v2481 = vmul.f32 %v2425, %v2467
        %v2482 = vmul.f32 %v2427, %v2467
        %v2483 = vmul.f32 %v2430, %v2467
        %v2484 = vmul.f32 %v2432, %v2467
        %v2486 = vperm.slane %v462, 0
        %v2488 = vadd.f32 %v2469, %v2486
        %v2489 = vadd.f32 %v2470, %v2486
        %v2490 = vadd.f32 %v2471, %v2486
        %v2491 = vadd.f32 %v2472, %v2486
        %v2492 = vadd.f32 %v2473, %v2486
        %v2493 = vadd.f32 %v2474, %v2486
        %v2494 = vadd.f32 %v2475, %v2486
        %v2495 = vadd.f32 %v2476, %v2486
        %v2496 = vadd.f32 %v2477, %v2486
        %v2497 = vadd.f32 %v2478, %v2486
        %v2498 = vadd.f32 %v2479, %v2486
        %v2499 = vadd.f32 %v2480, %v2486
        %v2500 = vadd.f32 %v2481, %v2486
        %v2501 = vadd.f32 %v2482, %v2486
        %v2502 = vadd.f32 %v2483, %v2486
        %v2503 = vadd.f32 %v2484, %v2486
        %v2504 = vadd.f32 %v2488, %v2450
        %v2505 = vadd.f32 %v2489, %v2451
        %v2506 = vadd.f32 %v2490, %v2452
        %v2507 = vadd.f32 %v2491, %v2453
        %v2508 = vadd.f32 %v2492, %v2454
        %v2509 = vadd.f32 %v2493, %v2455
        %v2510 = vadd.f32 %v2494, %v2456
        %v2511 = vadd.f32 %v2495, %v2457
        %v2512 = vadd.f32 %v2496, %v2458
        %v2513 = vadd.f32 %v2497, %v2459
        %v2514 = vadd.f32 %v2498, %v2460
        %v2515 = vadd.f32 %v2499, %v2461
        %v2516 = vadd.f32 %v2500, %v2462
        %v2517 = vadd.f32 %v2501, %v2463
        %v2518 = vadd.f32 %v2502, %v2464
        %v2519 = vadd.f32 %v2503, %v2465
        %v2520 = vmax.f32 %v2504, 0.0
        %v2521 = vmax.f32 %v2505, 0.0
        %v2522 = vmax.f32 %v2506, 0.0
        %v2523 = vmax.f32 %v2507, 0.0
        %v2524 = vmax.f32 %v2508, 0.0
        %v2525 = vmax.f32 %v2509, 0.0
        %v2526 = vmax.f32 %v2510, 0.0
        %v2527 = vmax.f32 %v2511, 0.0
        %v2528 = vmax.f32 %v2512, 0.0
        %v2529 = vmax.f32 %v2513, 0.0
        %v2530 = vmax.f32 %v2514, 0.0
        %v2531 = vmax.f32 %v2515, 0.0
        %v2532 = vmax.f32 %v2516, 0.0
        %v2533 = vmax.f32 %v2517, 0.0
        %v2534 = vmax.f32 %v2518, 0.0
        %v2535 = vmax.f32 %v2519, 0.0
        %2536 = vst.msk [vmem:[%s399] sm:$0xff] %vm527, %v2520
        %2537 = vst.msk [vmem:[%s399 + $0x8] sm:$0xff] %vm527, %v2521
        %2538 = vst.msk [vmem:[%s399 + $0x10] sm:$0xff] %vm527, %v2522
        %2539 = vst.msk [vmem:[%s399 + $0x18] sm:$0xff] %vm527, %v2523
        %2540 = vst.msk [vmem:[%s399 + $0x20] sm:$0xff] %vm527, %v2524
        %2541 = vst.msk [vmem:[%s399 + $0x28] sm:$0xff] %vm527, %v2525
        %2542 = vst.msk [vmem:[%s399 + $0x30] sm:$0xff] %vm527, %v2526
        %2543 = vst.msk [vmem:[%s399 + $0x38] sm:$0xff] %vm527, %v2527
        %2544 = vst.msk [vmem:[%s399 + $0x40] sm:$0xff] %vm527, %v2528
        %2545 = vst.msk [vmem:[%s399 + $0x48] sm:$0xff] %vm527, %v2529
        %2546 = vst.msk [vmem:[%s399 + $0x50] sm:$0xff] %vm527, %v2530
        %2547 = vst.msk [vmem:[%s399 + $0x58] sm:$0xff] %vm527, %v2531
        %2548 = vst.msk [vmem:[%s399 + $0x60] sm:$0xff] %vm527, %v2532
        %2549 = vst.msk [vmem:[%s399 + $0x68] sm:$0xff] %vm527, %v2533
        %2550 = vst.msk [vmem:[%s399 + $0x70] sm:$0xff] %vm527, %v2534
        %2551 = vst.msk [vmem:[%s399 + $0x78] sm:$0xff] %vm527, %v2535
        %s2552 = sand.u32 %s267, 1
        %s2553 = scalar_lea.sflag [#allocation7], %s2552
        %s2554 = sand.u32 %s267, 1
        %s2555 = smul.addr %s2554, 128
        %s2556 = scalar_lea.vmem [#allocation8], %s2555
        // Predicated region
        $region97: #{tpu_custom_call.1} parent=59 // pred_check
          %p2557 = pneg %p277
        $region98: #{tpu_custom_call.1} parent=59 // pred_check_branch
          %2559 = sbr.rel (%p2557) target = $region100
        $region99: #{tpu_custom_call.1} parent=59 // pred_region
          %s2560 = smul.u32 8, %s33
          %2562 = vsyncadd %s2553, 0
          %s2563 = smul.addr %s2560, 2
          %s2564 = smul.addr %s32, 32
          %s2565 = sadd.s32 %s2563, %s2564
          %s2566 = smul.addr %s2565, 8
          %s2567 = scalar_lea.hbm %s11, %s2566
          %s2568 = sshll.u32 %s2556, 4
          %s2569 = int_to_ptr.vmem [resolvable:$true] %s2568
          %s2570 = sshll.u32 %s2567, 4
          %s2571 = int_to_ptr.hbm [resolvable:$true] %s2570
          %2576 = dma.vmem_to_hbm [thread:$0]  %s2569, 2048, %s2571, %s2553, 128, 128, 8
        $region100: #{tpu_custom_call.1} parent=59 // pred_fallthru
          _
      $region60: #{tpu_custom_call.1} parent=5 // pred_fallthru
        _
      %p2577 = scmp.le.s32.totalorder 2, %s23
      // Predicated region
      $region101: #{tpu_custom_call.1} parent=5 // pred_check
        %p2578 = pneg %p2577
      $region102: #{tpu_custom_call.1} parent=5 // pred_check_branch
        %2580 = sbr.rel (%p2578) target = $region104
      $region103: #{tpu_custom_call.1} parent=5 // pred_region
        %s2581 = ssub.s32 %s23, 2
        // Predicated region
        $region105: #{tpu_custom_call.1} parent=103 // pred_check
          %p2582 = pneg %p283
        $region106: #{tpu_custom_call.1} parent=103 // pred_check_branch
          %2584 = sbr.rel (%p2582) target = $region108
        $region107: #{tpu_custom_call.1} parent=103 // pred_region
          %s2585 = sand.u32 %s268, 1
          %s2586 = scalar_lea.sflag [#allocation7], %s2585
          %s2587 = sand.u32 %s268, 1
          %s2588 = smul.addr %s2587, 128
          %s2589 = scalar_lea.vmem [#allocation8], %s2588
          %2591 = dma.done %s2586, 2048
        $region108: #{tpu_custom_call.1} parent=103 // pred_fallthru
          _
      $region104: #{tpu_custom_call.1} parent=5 // pred_fallthru
        _
    $region6: #{tpu_custom_call.1} parent=1 // loop_footer
      %s27 = sadd.s32 1, %s23
    $region7: #{tpu_custom_call.1} parent=1 // loop_footer_branch
      %22 = sbr.rel target = $region3
    $region8: #{tpu_custom_call.1} parent=1 // loop_exit
      _
    %2592 = vsyncpa [#allocation6], 1
    %s2593 = scalar_lea.sflag [#allocation6], 1
    %2594 = vsyncpa %s2593, 1
    %2595 = vsyncpa [#allocation7], 1
    %s2596 = scalar_lea.sflag [#allocation7], 1
    %2597 = vsyncpa %s2596, 1
  %2598 = vsyncmov [#allocation4]
  %s2599 = vpop.sfrf %2598
  %p2600 = scmp.eq.s32.totalorder %s2599, 0
  %p2601 = pneg %p2600
  %2603 = shalt.err (%p2601)
  %s2604 = scalar_lea.sflag [#allocation4], 1
  %2605 = vsyncmov %s2604
  %s2606 = vpop.sfrf %2605
  %p2607 = scmp.eq.s32.totalorder %s2606, 0
  %p2608 = pneg %p2607
  %2610 = shalt.err (%p2608)

</llo_original>
